<compile_context>
chip_gen: v6e
topology: v6e:2x2x1
jax: 0.10.0
libtpu: 0.0.40
codegen_flags: <defaults>
</compile_context>

<pallas_src>
import functools

import jax
import jax.numpy as jnp
from jax.experimental import pallas as pl
from jax.experimental.pallas import tpu as pltpu

# ---- model hyper-params (small, consistent with the module) ----
D_MODEL = 32     # d_model (E)
NHEAD   = 4      # nhead (H)
DH      = D_MODEL // NHEAD
L_TGT   = 8      # target sequence length
S_MEM   = 16     # memory sequence length
BATCH   = 2
LN_EPS  = 1e-5
NEG_INF = -1e30


def _cross_attn_kernel(tgt_ref, qpos_ref, mem_ref, pos_ref, w_ref, vec_ref, out_ref,
                       *, N, L, S, E, H):
    """Whole forward in one invocation, all-2D: MHA + residual + LayerNorm.

    tgt_ref/qpos_ref: (L*N, E)  rows ordered (l, n)   [contiguous flatten of (L, N, E)]
    mem_ref/pos_ref : (S*N, E)  rows ordered (s, n)
    w_ref           : (E, 4E)   [wq.T*scale | wk.T | wv.T | wo.T]
    vec_ref         : (8, E)    rows = bq*scale, bk, bv, bo, ln_w, ln_b, pad, pad
    out_ref         : (L*N, E)
    """
    Dh = E // H
    NL, NS = N * L, N * S

    bq    = vec_ref[0:1, :]
    bk    = vec_ref[1:2, :]
    bv    = vec_ref[2:3, :]
    bo    = vec_ref[3:4, :]
    gamma = vec_ref[4:5, :]
    beta  = vec_ref[5:6, :]

    tgt = tgt_ref[...]                              # (N*L, E)
    xq  = tgt + qpos_ref[...]                       # with_pos_embed(tgt, query_pos)
    xv  = mem_ref[...]                              # value = memory
    xk  = xv + pos_ref[...]                         # with_pos_embed(memory, pos)

    # --- input projections (scale already folded into the Q slab/bias) ---
    Q = jnp.dot(xq, w_ref[:, 0 * E:1 * E], preferred_element_type=jnp.float32) + bq
    K = jnp.dot(xk, w_ref[:, 1 * E:2 * E], preferred_element_type=jnp.float32) + bk
    V = jnp.dot(xv, w_ref[:, 2 * E:3 * E], preferred_element_type=jnp.float32) + bv

    # --- cross-batch mask: flattened row r belongs to batch (r % N) ---
    rq = jax.lax.broadcasted_iota(jnp.int32, (NL, NS), 0) % N
    rk = jax.lax.broadcasted_iota(jnp.int32, (NL, NS), 1) % N
    same_batch = rq == rk                            # (N*L, N*S) bool

    # --- per-head attention (static unroll over H); flat masked score matmul ---
    head_outs = []
    for h in range(H):
        sl = slice(h * Dh, (h + 1) * Dh)
        s = jnp.einsum('qd,kd->qk', Q[:, sl], K[:, sl],
                       preferred_element_type=jnp.float32)        # (N*L, N*S)
        s = jnp.where(same_batch, s, NEG_INF)
        s = s - jnp.max(s, axis=-1, keepdims=True)
        p = jnp.exp(s)                                             # masked entries -> 0
        p = p * pl.reciprocal(jnp.sum(p, axis=-1, keepdims=True), approx=True)
        head_outs.append(jnp.dot(p, V[:, sl],
                                 preferred_element_type=jnp.float32))   # (N*L, Dh)
    heads = jnp.concatenate(head_outs, axis=-1)                    # (N*L, E)

    # --- output projection ---
    attn = jnp.dot(heads, w_ref[:, 3 * E:4 * E],
                   preferred_element_type=jnp.float32) + bo

    # --- residual + LayerNorm (population variance, eps=1e-5) ---
    res = tgt + attn
    mean = jnp.mean(res, axis=-1, keepdims=True)
    var = jnp.mean((res - mean) ** 2, axis=-1, keepdims=True)
    out_ref[...] = (res - mean) * jax.lax.rsqrt(var + LN_EPS) * gamma + beta


# ---------------- one-time parameter packing (outside the per-call path) ----------------
def pack_params(params, nhead=NHEAD):
    E = params["wq"].shape[0]
    scale = 1.0 / ((E // nhead) ** 0.5)
    # lane-dense (E, 4E) = (32, 128) slab; attention scale folded into the Q columns
    w_t = jnp.concatenate([params["wq"].T * scale, params["wk"].T,
                           params["wv"].T, params["wo"].T], axis=1)
    zeros = jnp.zeros((E,), jnp.float32)
    vecs = jnp.stack([params["bq"] * scale, params["bk"], params["bv"], params["bo"],
                      params["ln_w"], params["ln_b"], zeros, zeros], axis=0)  # (8, E)
    return {"w": w_t, "vec": vecs}


# ---------------- per-call path: one jitted function = one pallas_call ----------------
@jax.jit
def _cross_attention_call(tgt, memory, query_pos, pos, w, vec):
    L, N, E = tgt.shape
    S = memory.shape[0]
    # contiguous flattens -> bitcasts, no data movement
    tgt2 = tgt.reshape(L * N, E)
    qp2  = query_pos.reshape(L * N, E)
    mem2 = memory.reshape(S * N, E)
    pos2 = pos.reshape(S * N, E)

    kernel = functools.partial(_cross_attn_kernel, N=N, L=L, S=S, E=E, H=NHEAD)
    vmem = pl.BlockSpec(memory_space=pltpu.MemorySpace.VMEM)
    out2 = pl.pallas_call(
        kernel,
        out_shape=jax.ShapeDtypeStruct((L * N, E), jnp.float32),
        in_specs=[vmem] * 6,
        out_specs=vmem,
    )(tgt2, qp2, mem2, pos2, w, vec)
    return out2.reshape(L, N, E)


def cross_attention_layer(tgt, memory, packed, query_pos=None, pos=None):
    """tgt: (L, N, E), memory: (S, N, E). Returns (L, N, E)."""
    if query_pos is None:
        query_pos = jnp.zeros_like(tgt)
    if pos is None:
        pos = jnp.zeros_like(memory)
    return _cross_attention_call(tgt, memory, query_pos, pos,
                                 packed["w"], packed["vec"])


# ---------------- deterministic parameter init (mirrors module __init__) ----------------
def init_params(key, d_model):
    k1, k2 = jax.random.split(key)
    # in_proj_weight (3E, E): xavier_uniform_ -> bound = sqrt(6 / (3E + E))
    bound_in = (6.0 / (3 * d_model + d_model)) ** 0.5
    in_proj_w = jax.random.uniform(k1, (3 * d_model, d_model), jnp.float32,
                                   -bound_in, bound_in)
    # out_proj.weight (E, E): xavier_uniform_ -> bound = sqrt(6 / (2E))
    bound_out = (6.0 / (2 * d_model)) ** 0.5
    wo = jax.random.uniform(k2, (d_model, d_model), jnp.float32,
                            -bound_out, bound_out)
    zeros = jnp.zeros((d_model,), jnp.float32)
    return {
        "wq": in_proj_w[0 * d_model:1 * d_model],
        "wk": in_proj_w[1 * d_model:2 * d_model],
        "wv": in_proj_w[2 * d_model:3 * d_model],
        "bq": zeros, "bk": zeros, "bv": zeros,           # in_proj_bias init = 0
        "wo": wo,
        "bo": zeros,                                     # out_proj bias init = 0
        "ln_w": jnp.ones((d_model,), jnp.float32),       # LayerNorm weight = 1
        "ln_b": zeros,                                   # LayerNorm bias = 0
    }


# ---------------- pure-JAX reference (same semantics as torch forward) ----------------
def reference(tgt, memory, params, query_pos, pos):
    E, H, Dh = D_MODEL, NHEAD, DH
    q_in = tgt + query_pos
    k_in = memory + pos
    Q = q_in @ params["wq"].T + params["bq"]             # (L, N, E)
    K = k_in @ params["wk"].T + params["bk"]             # (S, N, E)
    V = memory @ params["wv"].T + params["bv"]           # (S, N, E)
    L, N, _ = Q.shape
    S = K.shape[0]
    Qh = Q.reshape(L, N, H, Dh).transpose(1, 2, 0, 3)    # (N, H, L, Dh)
    Kh = K.reshape(S, N, H, Dh).transpose(1, 2, 0, 3)    # (N, H, S, Dh)
    Vh = V.reshape(S, N, H, Dh).transpose(1, 2, 0, 3)    # (N, H, S, Dh)
    s = jnp.einsum("nhld,nhsd->nhls", Qh, Kh) / (Dh ** 0.5)
    p = jax.nn.softmax(s, axis=-1)
    o = jnp.einsum("nhls,nhsd->nhld", p, Vh)             # (N, H, L, Dh)
    o = o.transpose(2, 0, 1, 3).reshape(L, N, E)         # (L, N, E)
    attn = o @ params["wo"].T + params["bo"]
    res = tgt + attn
    mean = res.mean(-1, keepdims=True)
    var = ((res - mean) ** 2).mean(-1, keepdims=True)
    return (res - mean) / jnp.sqrt(var + LN_EPS) * params["ln_w"] + params["ln_b"]


if __name__ == "__main__":
    key = jax.random.PRNGKey(0)
    kp, kt, km, kq, kpo = jax.random.split(key, 5)

    params = init_params(kp, D_MODEL)
    packed = pack_params(params)                         # one-time packing

    tgt       = jax.random.normal(kt,  (L_TGT, BATCH, D_MODEL), jnp.float32)
    memory    = jax.random.normal(km,  (S_MEM, BATCH, D_MODEL), jnp.float32)
    query_pos = jax.random.normal(kq,  (L_TGT, BATCH, D_MODEL), jnp.float32)
    pos       = jax.random.normal(kpo, (S_MEM, BATCH, D_MODEL), jnp.float32)

    out = cross_attention_layer(tgt, memory, packed, query_pos=query_pos, pos=pos)
    out = jax.block_until_ready(out)

    ref = reference(tgt, memory, params, query_pos, pos)
    assert out.shape == (L_TGT, BATCH, D_MODEL)
    # tolerance relaxed vs. exact f32 to cover the EUP approximate reciprocal in softmax
    assert jnp.allclose(out, ref, atol=2e-3, rtol=2e-3), "mismatch vs pure-JAX reference"

    print("KERNEL_OK")
</pallas_src>

<mosaic_0001>
module attributes {stable_mosaic.version = 11 : i64} {
  func.func @_cross_attn_kernel(%arg0: memref<16x32xf32, #tpu.memory_space<vmem>>, %arg1: memref<16x32xf32, #tpu.memory_space<vmem>>, %arg2: memref<32x32xf32, #tpu.memory_space<vmem>>, %arg3: memref<32x32xf32, #tpu.memory_space<vmem>>, %arg4: memref<32x128xf32, #tpu.memory_space<vmem>>, %arg5: memref<8x32xf32, #tpu.memory_space<vmem>>, %arg6: memref<16x32xf32, #tpu.memory_space<vmem>>) attributes {dimension_semantics = [], scalar_prefetch = 0 : i64, scratch_operands = 0 : i64, tpu.core_type = #tpu.core_type<tc>} {
    %c0 = arith.constant 0 : index
    %c0_0 = arith.constant 0 : index
    %0 = vector.load %arg5[%c0, %c0_0] : memref<8x32xf32, #tpu.memory_space<vmem>>, vector<1x32xf32>
    %c1 = arith.constant 1 : index
    %c0_1 = arith.constant 0 : index
    %1 = vector.load %arg5[%c1, %c0_1] : memref<8x32xf32, #tpu.memory_space<vmem>>, vector<1x32xf32>
    %c2 = arith.constant 2 : index
    %c0_2 = arith.constant 0 : index
    %2 = vector.load %arg5[%c2, %c0_2] : memref<8x32xf32, #tpu.memory_space<vmem>>, vector<1x32xf32>
    %c3 = arith.constant 3 : index
    %c0_3 = arith.constant 0 : index
    %3 = vector.load %arg5[%c3, %c0_3] : memref<8x32xf32, #tpu.memory_space<vmem>>, vector<1x32xf32>
    %c4 = arith.constant 4 : index
    %c0_4 = arith.constant 0 : index
    %4 = vector.load %arg5[%c4, %c0_4] : memref<8x32xf32, #tpu.memory_space<vmem>>, vector<1x32xf32>
    %c5 = arith.constant 5 : index
    %c0_5 = arith.constant 0 : index
    %5 = vector.load %arg5[%c5, %c0_5] : memref<8x32xf32, #tpu.memory_space<vmem>>, vector<1x32xf32>
    %c0_6 = arith.constant 0 : index
    %c0_7 = arith.constant 0 : index
    %6 = vector.load %arg0[%c0_6, %c0_7] : memref<16x32xf32, #tpu.memory_space<vmem>>, vector<16x32xf32>
    %c0_8 = arith.constant 0 : index
    %c0_9 = arith.constant 0 : index
    %7 = vector.load %arg1[%c0_8, %c0_9] : memref<16x32xf32, #tpu.memory_space<vmem>>, vector<16x32xf32>
    %8 = arith.addf %6, %7 : vector<16x32xf32>
    %c0_10 = arith.constant 0 : index
    %c0_11 = arith.constant 0 : index
    %9 = vector.load %arg2[%c0_10, %c0_11] : memref<32x32xf32, #tpu.memory_space<vmem>>, vector<32x32xf32>
    %c0_12 = arith.constant 0 : index
    %c0_13 = arith.constant 0 : index
    %10 = vector.load %arg3[%c0_12, %c0_13] : memref<32x32xf32, #tpu.memory_space<vmem>>, vector<32x32xf32>
    %11 = arith.addf %9, %10 : vector<32x32xf32>
    %c0_14 = arith.constant 0 : index
    %c0_15 = arith.constant 0 : index
    %12 = vector.load %arg4[%c0_14, %c0_15] : memref<32x128xf32, #tpu.memory_space<vmem>>, vector<32x32xf32>
    %cst = arith.constant dense<0.000000e+00> : vector<16x32xf32>
    %13 = tpu.matmul %8, %12, %cst {dimension_numbers = #tpu.dot_dimension_numbers<[1], [0], [0], [1], [0, 0, 1, 1], [], []>} : vector<16x32xf32>, vector<32x32xf32>, vector<16x32xf32> -> vector<16x32xf32>
    %14 = vector.broadcast %0 : vector<1x32xf32> to vector<16x32xf32>
    %15 = arith.addf %13, %14 : vector<16x32xf32>
    %c0_16 = arith.constant 0 : index
    %c32 = arith.constant 32 : index
    %16 = vector.load %arg4[%c0_16, %c32] : memref<32x128xf32, #tpu.memory_space<vmem>>, vector<32x32xf32>
    %cst_17 = arith.constant dense<0.000000e+00> : vector<32x32xf32>
    %17 = tpu.matmul %11, %16, %cst_17 {dimension_numbers = #tpu.dot_dimension_numbers<[1], [0], [0], [1], [0, 0, 1, 1], [], []>} : vector<32x32xf32>, vector<32x32xf32>, vector<32x32xf32> -> vector<32x32xf32>
    %18 = vector.broadcast %1 : vector<1x32xf32> to vector<32x32xf32>
    %19 = arith.addf %17, %18 : vector<32x32xf32>
    %c0_18 = arith.constant 0 : index
    %c64 = arith.constant 64 : index
    %20 = vector.load %arg4[%c0_18, %c64] : memref<32x128xf32, #tpu.memory_space<vmem>>, vector<32x32xf32>
    %cst_19 = arith.constant dense<0.000000e+00> : vector<32x32xf32>
    %21 = tpu.matmul %9, %20, %cst_19 {dimension_numbers = #tpu.dot_dimension_numbers<[1], [0], [0], [1], [0, 0, 1, 1], [], []>} : vector<32x32xf32>, vector<32x32xf32>, vector<32x32xf32> -> vector<32x32xf32>
    %22 = vector.broadcast %2 : vector<1x32xf32> to vector<32x32xf32>
    %23 = arith.addf %21, %22 : vector<32x32xf32>
    %24 = tpu.iota {dimensions = array<i32: 0>} : vector<16x32xi32>
    %c2_i32 = arith.constant 2 : i32
    %c0_i32 = arith.constant 0 : i32
    %25 = arith.cmpi eq, %c2_i32, %c0_i32 : i32
    %c1_i32 = arith.constant 1 : i32
    %26 = arith.select %25, %c1_i32, %c2_i32 : i32
    %27 = vector.broadcast %26 : i32 to vector<16x32xi32>
    %28 = arith.remsi %24, %27 : vector<16x32xi32>
    %c0_i32_20 = arith.constant 0 : i32
    %29 = vector.broadcast %c0_i32_20 : i32 to vector<16x32xi32>
    %30 = arith.cmpi ne, %28, %29 : vector<16x32xi32>
    %c0_i32_21 = arith.constant 0 : i32
    %31 = vector.broadcast %c0_i32_21 : i32 to vector<16x32xi32>
    %32 = arith.cmpi slt, %28, %31 : vector<16x32xi32>
    %c0_i32_22 = arith.constant 0 : i32
    %33 = arith.cmpi slt, %26, %c0_i32_22 : i32
    %34 = vector.broadcast %33 : i1 to vector<16x32xi1>
    %35 = vector.broadcast %34 : vector<16x32xi1> to vector<16x32xi1>
    %36 = arith.xori %32, %35 : vector<16x32xi1>
    %37 = arith.andi %36, %30 : vector<16x32xi1>
    %38 = vector.broadcast %26 : i32 to vector<16x32xi32>
    %39 = arith.addi %28, %38 : vector<16x32xi32>
    %40 = arith.select %37, %39, %28 : vector<16x32xi1>, vector<16x32xi32>
    %41 = tpu.iota {dimensions = array<i32: 1>} : vector<16x32xi32>
    %c2_i32_23 = arith.constant 2 : i32
    %c0_i32_24 = arith.constant 0 : i32
    %42 = arith.cmpi eq, %c2_i32_23, %c0_i32_24 : i32
    %c1_i32_25 = arith.constant 1 : i32
    %43 = arith.select %42, %c1_i32_25, %c2_i32_23 : i32
    %44 = vector.broadcast %43 : i32 to vector<16x32xi32>
    %45 = arith.remsi %41, %44 : vector<16x32xi32>
    %c0_i32_26 = arith.constant 0 : i32
    %46 = vector.broadcast %c0_i32_26 : i32 to vector<16x32xi32>
    %47 = arith.cmpi ne, %45, %46 : vector<16x32xi32>
    %c0_i32_27 = arith.constant 0 : i32
    %48 = vector.broadcast %c0_i32_27 : i32 to vector<16x32xi32>
    %49 = arith.cmpi slt, %45, %48 : vector<16x32xi32>
    %c0_i32_28 = arith.constant 0 : i32
    %50 = arith.cmpi slt, %43, %c0_i32_28 : i32
    %51 = vector.broadcast %50 : i1 to vector<16x32xi1>
    %52 = vector.broadcast %51 : vector<16x32xi1> to vector<16x32xi1>
    %53 = arith.xori %49, %52 : vector<16x32xi1>
    %54 = arith.andi %53, %47 : vector<16x32xi1>
    %55 = vector.broadcast %43 : i32 to vector<16x32xi32>
    %56 = arith.addi %45, %55 : vector<16x32xi32>
    %57 = arith.select %54, %56, %45 : vector<16x32xi1>, vector<16x32xi32>
    %58 = arith.cmpi eq, %40, %57 : vector<16x32xi32>
    %59 = vector.extract_strided_slice %15 {offsets = [0, 0], sizes = [16, 8], strides = [1, 1]} : vector<16x32xf32> to vector<16x8xf32>
    %60 = vector.extract_strided_slice %19 {offsets = [0, 0], sizes = [32, 8], strides = [1, 1]} : vector<32x32xf32> to vector<32x8xf32>
    "tpu.trace_start"() <{level = 10 : i32, message = "qd,kd->qk"}> : () -> ()
    %cst_29 = arith.constant dense<0.000000e+00> : vector<16x32xf32>
    %61 = tpu.matmul %59, %60, %cst_29 {dimension_numbers = #tpu.dot_dimension_numbers<[1], [1], [0], [0], [0, 0, 1, 0], [], []>} : vector<16x8xf32>, vector<32x8xf32>, vector<16x32xf32> -> vector<16x32xf32>
    %cst_30 = arith.constant -1.000000e+30 : f32
    "tpu.trace_stop"() : () -> ()
    %62 = vector.broadcast %cst_30 : f32 to vector<16x32xf32>
    %63 = arith.select %58, %61, %62 : vector<16x32xi1>, vector<16x32xf32>
    %cst_31 = arith.constant dense<0xFF800000> : vector<16xf32>
    %64 = vector.multi_reduction <maximumf>, %63, %cst_31 [1] : vector<16x32xf32> to vector<16xf32>
    %65 = vector.shape_cast %64 : vector<16xf32> to vector<16x1xf32>
    %66 = vector.broadcast %65 : vector<16x1xf32> to vector<16x32xf32>
    %67 = arith.subf %63, %66 : vector<16x32xf32>
    %68 = math.exp %67 : vector<16x32xf32>
    %cst_32 = arith.constant dense<0.000000e+00> : vector<16xf32>
    %69 = vector.multi_reduction <add>, %68, %cst_32 [1] : vector<16x32xf32> to vector<16xf32>
    %70 = vector.shape_cast %69 : vector<16xf32> to vector<16x1xf32>
    %71 = tpu.reciprocal %70 {approx = true} : vector<16x1xf32> -> vector<16x1xf32>
    %72 = vector.broadcast %71 : vector<16x1xf32> to vector<16x32xf32>
    %73 = arith.mulf %68, %72 : vector<16x32xf32>
    %74 = vector.extract_strided_slice %23 {offsets = [0, 0], sizes = [32, 8], strides = [1, 1]} : vector<32x32xf32> to vector<32x8xf32>
    %cst_33 = arith.constant dense<0.000000e+00> : vector<16x8xf32>
    %75 = tpu.matmul %73, %74, %cst_33 {dimension_numbers = #tpu.dot_dimension_numbers<[1], [0], [0], [1], [0, 0, 1, 1], [], []>} : vector<16x32xf32>, vector<32x8xf32>, vector<16x8xf32> -> vector<16x8xf32>
    %76 = vector.extract_strided_slice %15 {offsets = [0, 8], sizes = [16, 8], strides = [1, 1]} : vector<16x32xf32> to vector<16x8xf32>
    %77 = vector.extract_strided_slice %19 {offsets = [0, 8], sizes = [32, 8], strides = [1, 1]} : vector<32x32xf32> to vector<32x8xf32>
    "tpu.trace_start"() <{level = 10 : i32, message = "qd,kd->qk"}> : () -> ()
    %cst_34 = arith.constant dense<0.000000e+00> : vector<16x32xf32>
    %78 = tpu.matmul %76, %77, %cst_34 {dimension_numbers = #tpu.dot_dimension_numbers<[1], [1], [0], [0], [0, 0, 1, 0], [], []>} : vector<16x8xf32>, vector<32x8xf32>, vector<16x32xf32> -> vector<16x32xf32>
    %cst_35 = arith.constant -1.000000e+30 : f32
    "tpu.trace_stop"() : () -> ()
    %79 = vector.broadcast %cst_35 : f32 to vector<16x32xf32>
    %80 = arith.select %58, %78, %79 : vector<16x32xi1>, vector<16x32xf32>
    %cst_36 = arith.constant dense<0xFF800000> : vector<16xf32>
    %81 = vector.multi_reduction <maximumf>, %80, %cst_36 [1] : vector<16x32xf32> to vector<16xf32>
    %82 = vector.shape_cast %81 : vector<16xf32> to vector<16x1xf32>
    %83 = vector.broadcast %82 : vector<16x1xf32> to vector<16x32xf32>
    %84 = arith.subf %80, %83 : vector<16x32xf32>
    %85 = math.exp %84 : vector<16x32xf32>
    %cst_37 = arith.constant dense<0.000000e+00> : vector<16xf32>
    %86 = vector.multi_reduction <add>, %85, %cst_37 [1] : vector<16x32xf32> to vector<16xf32>
    %87 = vector.shape_cast %86 : vector<16xf32> to vector<16x1xf32>
    %88 = tpu.reciprocal %87 {approx = true} : vector<16x1xf32> -> vector<16x1xf32>
    %89 = vector.broadcast %88 : vector<16x1xf32> to vector<16x32xf32>
    %90 = arith.mulf %85, %89 : vector<16x32xf32>
    %91 = vector.extract_strided_slice %23 {offsets = [0, 8], sizes = [32, 8], strides = [1, 1]} : vector<32x32xf32> to vector<32x8xf32>
    %cst_38 = arith.constant dense<0.000000e+00> : vector<16x8xf32>
    %92 = tpu.matmul %90, %91, %cst_38 {dimension_numbers = #tpu.dot_dimension_numbers<[1], [0], [0], [1], [0, 0, 1, 1], [], []>} : vector<16x32xf32>, vector<32x8xf32>, vector<16x8xf32> -> vector<16x8xf32>
    %93 = vector.extract_strided_slice %15 {offsets = [0, 16], sizes = [16, 8], strides = [1, 1]} : vector<16x32xf32> to vector<16x8xf32>
    %94 = vector.extract_strided_slice %19 {offsets = [0, 16], sizes = [32, 8], strides = [1, 1]} : vector<32x32xf32> to vector<32x8xf32>
    "tpu.trace_start"() <{level = 10 : i32, message = "qd,kd->qk"}> : () -> ()
    %cst_39 = arith.constant dense<0.000000e+00> : vector<16x32xf32>
    %95 = tpu.matmul %93, %94, %cst_39 {dimension_numbers = #tpu.dot_dimension_numbers<[1], [1], [0], [0], [0, 0, 1, 0], [], []>} : vector<16x8xf32>, vector<32x8xf32>, vector<16x32xf32> -> vector<16x32xf32>
    %cst_40 = arith.constant -1.000000e+30 : f32
    "tpu.trace_stop"() : () -> ()
    %96 = vector.broadcast %cst_40 : f32 to vector<16x32xf32>
    %97 = arith.select %58, %95, %96 : vector<16x32xi1>, vector<16x32xf32>
    %cst_41 = arith.constant dense<0xFF800000> : vector<16xf32>
    %98 = vector.multi_reduction <maximumf>, %97, %cst_41 [1] : vector<16x32xf32> to vector<16xf32>
    %99 = vector.shape_cast %98 : vector<16xf32> to vector<16x1xf32>
    %100 = vector.broadcast %99 : vector<16x1xf32> to vector<16x32xf32>
    %101 = arith.subf %97, %100 : vector<16x32xf32>
    %102 = math.exp %101 : vector<16x32xf32>
    %cst_42 = arith.constant dense<0.000000e+00> : vector<16xf32>
    %103 = vector.multi_reduction <add>, %102, %cst_42 [1] : vector<16x32xf32> to vector<16xf32>
    %104 = vector.shape_cast %103 : vector<16xf32> to vector<16x1xf32>
    %105 = tpu.reciprocal %104 {approx = true} : vector<16x1xf32> -> vector<16x1xf32>
    %106 = vector.broadcast %105 : vector<16x1xf32> to vector<16x32xf32>
    %107 = arith.mulf %102, %106 : vector<16x32xf32>
    %108 = vector.extract_strided_slice %23 {offsets = [0, 16], sizes = [32, 8], strides = [1, 1]} : vector<32x32xf32> to vector<32x8xf32>
    %cst_43 = arith.constant dense<0.000000e+00> : vector<16x8xf32>
    %109 = tpu.matmul %107, %108, %cst_43 {dimension_numbers = #tpu.dot_dimension_numbers<[1], [0], [0], [1], [0, 0, 1, 1], [], []>} : vector<16x32xf32>, vector<32x8xf32>, vector<16x8xf32> -> vector<16x8xf32>
    %110 = vector.extract_strided_slice %15 {offsets = [0, 24], sizes = [16, 8], strides = [1, 1]} : vector<16x32xf32> to vector<16x8xf32>
    %111 = vector.extract_strided_slice %19 {offsets = [0, 24], sizes = [32, 8], strides = [1, 1]} : vector<32x32xf32> to vector<32x8xf32>
    "tpu.trace_start"() <{level = 10 : i32, message = "qd,kd->qk"}> : () -> ()
    %cst_44 = arith.constant dense<0.000000e+00> : vector<16x32xf32>
    %112 = tpu.matmul %110, %111, %cst_44 {dimension_numbers = #tpu.dot_dimension_numbers<[1], [1], [0], [0], [0, 0, 1, 0], [], []>} : vector<16x8xf32>, vector<32x8xf32>, vector<16x32xf32> -> vector<16x32xf32>
    %cst_45 = arith.constant -1.000000e+30 : f32
    "tpu.trace_stop"() : () -> ()
    %113 = vector.broadcast %cst_45 : f32 to vector<16x32xf32>
    %114 = arith.select %58, %112, %113 : vector<16x32xi1>, vector<16x32xf32>
    %cst_46 = arith.constant dense<0xFF800000> : vector<16xf32>
    %115 = vector.multi_reduction <maximumf>, %114, %cst_46 [1] : vector<16x32xf32> to vector<16xf32>
    %116 = vector.shape_cast %115 : vector<16xf32> to vector<16x1xf32>
    %117 = vector.broadcast %116 : vector<16x1xf32> to vector<16x32xf32>
    %118 = arith.subf %114, %117 : vector<16x32xf32>
    %119 = math.exp %118 : vector<16x32xf32>
    %cst_47 = arith.constant dense<0.000000e+00> : vector<16xf32>
    %120 = vector.multi_reduction <add>, %119, %cst_47 [1] : vector<16x32xf32> to vector<16xf32>
    %121 = vector.shape_cast %120 : vector<16xf32> to vector<16x1xf32>
    %122 = tpu.reciprocal %121 {approx = true} : vector<16x1xf32> -> vector<16x1xf32>
    %123 = vector.broadcast %122 : vector<16x1xf32> to vector<16x32xf32>
    %124 = arith.mulf %119, %123 : vector<16x32xf32>
    %125 = vector.extract_strided_slice %23 {offsets = [0, 24], sizes = [32, 8], strides = [1, 1]} : vector<32x32xf32> to vector<32x8xf32>
    %cst_48 = arith.constant dense<0.000000e+00> : vector<16x8xf32>
    %126 = tpu.matmul %124, %125, %cst_48 {dimension_numbers = #tpu.dot_dimension_numbers<[1], [0], [0], [1], [0, 0, 1, 1], [], []>} : vector<16x32xf32>, vector<32x8xf32>, vector<16x8xf32> -> vector<16x8xf32>
    %127 = tpu.concatenate %75, %92, %109, %126 in 1 : vector<16x8xf32>, vector<16x8xf32>, vector<16x8xf32>, vector<16x8xf32> -> vector<16x32xf32>
    %c0_49 = arith.constant 0 : index
    %c96 = arith.constant 96 : index
    %128 = vector.load %arg4[%c0_49, %c96] : memref<32x128xf32, #tpu.memory_space<vmem>>, vector<32x32xf32>
    %cst_50 = arith.constant dense<0.000000e+00> : vector<16x32xf32>
    %129 = tpu.matmul %127, %128, %cst_50 {dimension_numbers = #tpu.dot_dimension_numbers<[1], [0], [0], [1], [0, 0, 1, 1], [], []>} : vector<16x32xf32>, vector<32x32xf32>, vector<16x32xf32> -> vector<16x32xf32>
    %130 = vector.broadcast %3 : vector<1x32xf32> to vector<16x32xf32>
    %131 = arith.addf %129, %130 : vector<16x32xf32>
    %132 = arith.addf %6, %131 : vector<16x32xf32>
    %cst_51 = arith.constant dense<0.000000e+00> : vector<16xf32>
    %133 = vector.multi_reduction <add>, %132, %cst_51 [1] : vector<16x32xf32> to vector<16xf32>
    %134 = vector.shape_cast %133 : vector<16xf32> to vector<16x1xf32>
    %cst_52 = arith.constant 3.200000e+01 : f32
    %135 = vector.broadcast %cst_52 : f32 to vector<16x1xf32>
    %136 = arith.divf %134, %135 : vector<16x1xf32>
    %137 = vector.broadcast %136 : vector<16x1xf32> to vector<16x32xf32>
    %138 = arith.subf %132, %137 : vector<16x32xf32>
    %139 = arith.mulf %138, %138 : vector<16x32xf32>
    %cst_53 = arith.constant dense<0.000000e+00> : vector<16xf32>
    %140 = vector.multi_reduction <add>, %139, %cst_53 [1] : vector<16x32xf32> to vector<16xf32>
    %141 = vector.shape_cast %140 : vector<16xf32> to vector<16x1xf32>
    %cst_54 = arith.constant 3.200000e+01 : f32
    %142 = vector.broadcast %cst_54 : f32 to vector<16x1xf32>
    %143 = arith.divf %141, %142 : vector<16x1xf32>
    %144 = vector.broadcast %136 : vector<16x1xf32> to vector<16x32xf32>
    %145 = arith.subf %132, %144 : vector<16x32xf32>
    %cst_55 = arith.constant 9.99999974E-6 : f32
    %146 = vector.broadcast %cst_55 : f32 to vector<16x1xf32>
    %147 = arith.addf %143, %146 : vector<16x1xf32>
    %148 = math.rsqrt %147 : vector<16x1xf32>
    %149 = vector.broadcast %148 : vector<16x1xf32> to vector<16x32xf32>
    %150 = arith.mulf %145, %149 : vector<16x32xf32>
    %151 = vector.broadcast %4 : vector<1x32xf32> to vector<16x32xf32>
    %152 = arith.mulf %150, %151 : vector<16x32xf32>
    %153 = vector.broadcast %5 : vector<1x32xf32> to vector<16x32xf32>
    %154 = arith.addf %152, %153 : vector<16x32xf32>
    %c0_56 = arith.constant 0 : index
    %c0_57 = arith.constant 0 : index
    %155 = vector.load %arg6[%c0_56, %c0_57] : memref<16x32xf32, #tpu.memory_space<vmem>>, vector<16x32xf32>
    tpu.vector_store %arg6[%c0_56, %c0_57], %154 {strides = array<i32>} : memref<16x32xf32, #tpu.memory_space<vmem>>, vector<16x32xf32>,
    return
  }
}

</mosaic_0001>

<llo_original>
// kernel: _cross_attention_call.1
$region0: #{_cross_attention_call.1}
  #allocation0 [shape = 'u32[]', space=smem, size = 0x4, offset = 0x4, fixed_abs, tag = 'smem constant byte address 0x4 - core index']
  #allocation1 [shape = 'u32[144,128]{1,0:T(1,128)}', space=vmem, size = 0x12000, scoped, tag = 'internal scratch']
  %s0 = inlined_call_operand.hbm [shape: f32[16,32], index: 0, kind: input, shape index: {}]
  %s1 = inlined_call_operand.hbm [shape: f32[16,32], index: 1, kind: input, shape index: {}]
  %s2 = inlined_call_operand.hbm [shape: f32[32,32], index: 2, kind: input, shape index: {}]
  %s3 = inlined_call_operand.hbm [shape: f32[32,32], index: 3, kind: input, shape index: {}]
  %s4 = inlined_call_operand.hbm [shape: f32[32,128], index: 4, kind: input, shape index: {}]
  %s5 = inlined_call_operand.vmem [shape: f32[8,32], index: 5, kind: input, shape index: {}]
  %s6 = inlined_call_operand.hbm [shape: f32[16,32], index: 6, kind: output, shape index: {}]
  %s7 = sld [smem:[#allocation0]]
  $region54: #{_cross_attention_call.1} parent=0
    _
  %s9 = ssub.s32 1, %s7
  %s10 = scalar_select 0, %s9, %s7
  $region1: #{_cross_attention_call.1} parent=0
    #allocation2 [shape = 'u8[8192]{0}', space=vmem, size = 0x2000, scoped, tag = 'input window, operand 0, single buffered']
    #allocation3 [shape = 's32[1]{0}', space=sflag, size = 0x4, scoped, tag = 'scoped memory for _cross_attention_call.1']
    #allocation4 [shape = 's32[1]{0}', space=sflag, size = 0x4, scoped, tag = 'scoped memory for _cross_attention_call.1']
    #allocation5 [shape = 'u8[8192]{0}', space=vmem, size = 0x2000, scoped, tag = 'input window, operand 1, single buffered']
    #allocation6 [shape = 's32[1]{0}', space=sflag, size = 0x4, scoped, tag = 'scoped memory for _cross_attention_call.1']
    #allocation7 [shape = 'u8[16384]{0}', space=vmem, size = 0x4000, scoped, tag = 'input window, operand 2, single buffered']
    #allocation8 [shape = 'u8[16384]{0}', space=vmem, size = 0x4000, scoped, tag = 'input window, operand 3, single buffered']
    #allocation9 [shape = 's32[1]{0}', space=sflag, size = 0x4, scoped, tag = 'scoped memory for _cross_attention_call.1']
    #allocation10 [shape = 'u8[16384]{0}', space=vmem, size = 0x4000, scoped, tag = 'input window, operand 4, single buffered']
    #allocation11 [shape = 'u8[8192]{0}', space=vmem, size = 0x2000, scoped, tag = 'output window, operand 0, single buffered']
    %11 = vsyncpa [#allocation3], 0
    %12 = vsyncpa [#allocation6], 0
    %13 = vsyncpa [#allocation9], 0
    %14 = vsyncpa [#allocation4], 0
    // Predicated region
    $region2: #{_cross_attention_call.1} parent=1 // pred_check
      _
    $region3: #{_cross_attention_call.1} parent=1 // pred_check_branch
      %16 = sbr.rel (0) target = $region5
    $region4: #{_cross_attention_call.1} parent=1 // pred_region
      %s18 = ssub.s32 256, 256
      %19 = vsyncadd [#allocation3], %s18
      %s20 = sshll.u32 [#allocation2], 4
      %s21 = int_to_ptr.vmem [resolvable:$true] %s20
      %26 = dma.hbm_to_vmem [thread:$0]  %s0, 256, %s21, [#allocation3], 128, 128, 8
    $region5: #{_cross_attention_call.1} parent=1 // pred_fallthru
      _
    // Predicated region
    $region6: #{_cross_attention_call.1} parent=1 // pred_check
      _
    $region7: #{_cross_attention_call.1} parent=1 // pred_check_branch
      %28 = sbr.rel (0) target = $region9
    $region8: #{_cross_attention_call.1} parent=1 // pred_region
      %s30 = ssub.s32 256, 256
      %31 = vsyncadd [#allocation6], %s30
      %s32 = sshll.u32 [#allocation5], 4
      %s33 = int_to_ptr.vmem [resolvable:$true] %s32
      %38 = dma.hbm_to_vmem [thread:$0]  %s1, 256, %s33, [#allocation6], 128, 128, 8
    $region9: #{_cross_attention_call.1} parent=1 // pred_fallthru
      _
    // Predicated region
    $region10: #{_cross_attention_call.1} parent=1 // pred_check
      _
    $region11: #{_cross_attention_call.1} parent=1 // pred_check_branch
      %40 = sbr.rel (0) target = $region13
    $region12: #{_cross_attention_call.1} parent=1 // pred_region
      %s42 = ssub.s32 512, 512
      %43 = vsyncadd [#allocation6], %s42
      %s44 = sshll.u32 [#allocation7], 4
      %s45 = int_to_ptr.vmem [resolvable:$true] %s44
      %50 = dma.hbm_to_vmem [thread:$0]  %s2, 512, %s45, [#allocation6], 128, 128, 8
    $region13: #{_cross_attention_call.1} parent=1 // pred_fallthru
      _
    // Predicated region
    $region14: #{_cross_attention_call.1} parent=1 // pred_check
      _
    $region15: #{_cross_attention_call.1} parent=1 // pred_check_branch
      %52 = sbr.rel (0) target = $region17
    $region16: #{_cross_attention_call.1} parent=1 // pred_region
      %s54 = ssub.s32 512, 512
      %55 = vsyncadd [#allocation9], %s54
      %s56 = sshll.u32 [#allocation8], 4
      %s57 = int_to_ptr.vmem [resolvable:$true] %s56
      %62 = dma.hbm_to_vmem [thread:$0]  %s3, 512, %s57, [#allocation9], 128, 128, 8
    $region17: #{_cross_attention_call.1} parent=1 // pred_fallthru
      _
    // Predicated region
    $region18: #{_cross_attention_call.1} parent=1 // pred_check
      _
    $region19: #{_cross_attention_call.1} parent=1 // pred_check_branch
      %64 = sbr.rel (0) target = $region21
    $region20: #{_cross_attention_call.1} parent=1 // pred_region
      %s66 = ssub.s32 512, 512
      %67 = vsyncadd [#allocation9], %s66
      %s68 = sshll.u32 [#allocation10], 4
      %s69 = int_to_ptr.vmem [resolvable:$true] %s68
      %74 = dma.hbm_to_vmem [thread:$0]  %s4, 512, %s69, [#allocation9], 128, 128, 8
    $region21: #{_cross_attention_call.1} parent=1 // pred_fallthru
      _
    // Predicated region
    $region22: #{_cross_attention_call.1} parent=1 // pred_check
      _
    $region23: #{_cross_attention_call.1} parent=1 // pred_check_branch
      %76 = sbr.rel (0) target = $region25
    $region24: #{_cross_attention_call.1} parent=1 // pred_region
      _
    $region25: #{_cross_attention_call.1} parent=1 // pred_fallthru
      _
    // Predicated region
    $region26: #{_cross_attention_call.1} parent=1 // pred_check
      _
    $region27: #{_cross_attention_call.1} parent=1 // pred_check_branch
      %78 = sbr.rel (0) target = $region29
    $region28: #{_cross_attention_call.1} parent=1 // pred_region
      %79 = dma.done [#allocation3], 256
    $region29: #{_cross_attention_call.1} parent=1 // pred_fallthru
      _
    // Predicated region
    $region30: #{_cross_attention_call.1} parent=1 // pred_check
      _
    $region31: #{_cross_attention_call.1} parent=1 // pred_check_branch
      %81 = sbr.rel (0) target = $region33
    $region32: #{_cross_attention_call.1} parent=1 // pred_region
      %82 = dma.done [#allocation6], 256
    $region33: #{_cross_attention_call.1} parent=1 // pred_fallthru
      _
    // Predicated region
    $region34: #{_cross_attention_call.1} parent=1 // pred_check
      _
    $region35: #{_cross_attention_call.1} parent=1 // pred_check_branch
      %84 = sbr.rel (0) target = $region37
    $region36: #{_cross_attention_call.1} parent=1 // pred_region
      %85 = dma.done [#allocation6], 512
    $region37: #{_cross_attention_call.1} parent=1 // pred_fallthru
      _
    // Predicated region
    $region38: #{_cross_attention_call.1} parent=1 // pred_check
      _
    $region39: #{_cross_attention_call.1} parent=1 // pred_check_branch
      %87 = sbr.rel (0) target = $region41
    $region40: #{_cross_attention_call.1} parent=1 // pred_region
      %88 = dma.done [#allocation9], 512
    $region41: #{_cross_attention_call.1} parent=1 // pred_fallthru
      _
    // Predicated region
    $region42: #{_cross_attention_call.1} parent=1 // pred_check
      _
    $region43: #{_cross_attention_call.1} parent=1 // pred_check_branch
      %90 = sbr.rel (0) target = $region45
    $region44: #{_cross_attention_call.1} parent=1 // pred_region
      %91 = dma.done [#allocation9], 512
    $region45: #{_cross_attention_call.1} parent=1 // pred_fallthru
      _
    %v92 = vld [vmem:[%s5] sm:$0x1]
    %v93 = vld [vmem:[%s5 + $0x1] sm:$0x1]
    %v94 = vld [vmem:[%s5 + $0x2] sm:$0x1]
    %v95 = vld [vmem:[%s5 + $0x3] sm:$0x1]
    %v96 = vld [vmem:[%s5 + $0x4] sm:$0x1]
    %v97 = vld [vmem:[%s5 + $0x5] sm:$0x1]
    %v98 = vld [vmem:[#allocation2] sm:$0xff]
    %v99 = vld [vmem:[#allocation2 + $0x8] sm:$0xff]
    %v100 = vld [vmem:[#allocation5] sm:$0xff]
    %v101 = vld [vmem:[#allocation5 + $0x8] sm:$0xff]
    %v102 = vadd.f32 %v98, %v100
    %v103 = vadd.f32 %v99, %v101
    %v104 = vld [vmem:[#allocation7] sm:$0xff]
    %v105 = vld [vmem:[#allocation7 + $0x8] sm:$0xff]
    %v106 = vld [vmem:[#allocation7 + $0x10] sm:$0xff]
    %v107 = vld [vmem:[#allocation7 + $0x18] sm:$0xff]
    %v108 = vld [vmem:[#allocation8] sm:$0xff]
    %v109 = vld [vmem:[#allocation8 + $0x8] sm:$0xff]
    %v110 = vld [vmem:[#allocation8 + $0x10] sm:$0xff]
    %v111 = vld [vmem:[#allocation8 + $0x18] sm:$0xff]
    %v112 = vadd.f32 %v104, %v108
    %v113 = vadd.f32 %v105, %v109
    %v114 = vadd.f32 %v106, %v110
    %v115 = vadd.f32 %v107, %v111
    %v116 = vld [vmem:[#allocation10] sm:$0xff]
    %v117 = vld [vmem:[#allocation10 + $0x8] sm:$0xff]
    %v118 = vld [vmem:[#allocation10 + $0x10] sm:$0xff]
    %v119 = vld [vmem:[#allocation10 + $0x18] sm:$0xff]
    %v120 = vlaneseq
    %v121 = vshrl.u32 %v120, 7
    %v122 = vsub.s32 0, %v121
    %v123 = vrot.slane %v92, %v122
    %vm124 = vcmask 261120
    %v126 = vsel %vm124, %v102, 0
    %v129 = vsel %vm124, %v103, 0
    %131 = vmatprep.subr.mxu0 0.0
    %132 = vmatpush1.msra.mxu0 0.0
    %133 = vmatprep.subr.mxu0 0.0
    %134 = vmatpush1.msra.mxu0 0.0
    %135 = vmatprep.subr.mxu0 0.0
    %136 = vmatpush1.msra.mxu0 0.0
    %137 = vmatprep.subr.mxu0 0.0
    %138 = vmatpush1.msra.mxu0 0.0
    %139 = vmatprep.subr.mxu0 0.0
    %140 = vmatpush1.msra.mxu0 0.0
    %141 = vmatprep.subr.mxu0 0.0
    %142 = vmatpush1.msra.mxu0 0.0
    %143 = vmatprep.subr.mxu0 0.0
    %144 = vmatpush1.msra.mxu0 0.0
    %145 = vmatprep.subr.mxu0 0.0
    %146 = vmatpush1.msra.mxu0 0.0
    %147 = vmatprep.subr.mxu0 0.0
    %148 = vmatpush1.msra.mxu0 0.0
    %149 = vmatprep.subr.mxu0 0.0
    %150 = vmatpush1.msra.mxu0 0.0
    %151 = vmatprep.subr.mxu0 0.0
    %152 = vmatpush1.msra.mxu0 0.0
    %153 = vmatprep.subr.mxu0 0.0
    %154 = vmatpush1.msra.mxu0 0.0
    %155 = vmatprep.subr.mxu0 0.0
    %156 = vmatpush1.msra.mxu0 %v119
    %157 = vmatprep.subr.mxu0 0.0
    %158 = vmatpush1.msra.mxu0 %v118
    %159 = vmatprep.subr.mxu0 0.0
    %160 = vmatpush1.msra.mxu0 %v117
    %161 = vmatprep.subr.mxu0 0.0
    %162 = vmatpush1.msra.mxu0 %v116
    %163 = vmatprep.subr.mxu0 0.0
    %164 = vmatpush2.msra.mxu0 0.0
    %165 = vmatprep.subr.mxu0 0.0
    %166 = vmatpush2.msra.mxu0 0.0
    %167 = vmatprep.subr.mxu0 0.0
    %168 = vmatpush2.msra.mxu0 0.0
    %169 = vmatprep.subr.mxu0 0.0
    %170 = vmatpush2.msra.mxu0 0.0
    %171 = vmatprep.subr.mxu0 0.0
    %172 = vmatpush2.msra.mxu0 0.0
    %173 = vmatprep.subr.mxu0 0.0
    %174 = vmatpush2.msra.mxu0 0.0
    %175 = vmatprep.subr.mxu0 0.0
    %176 = vmatpush2.msra.mxu0 0.0
    %177 = vmatprep.subr.mxu0 0.0
    %178 = vmatpush2.msra.mxu0 0.0
    %179 = vmatprep.subr.mxu0 0.0
    %180 = vmatpush2.msra.mxu0 0.0
    %181 = vmatprep.subr.mxu0 0.0
    %182 = vmatpush2.msra.mxu0 0.0
    %183 = vmatprep.subr.mxu0 0.0
    %184 = vmatpush2.msra.mxu0 0.0
    %185 = vmatprep.subr.mxu0 0.0
    %186 = vmatpush2.msra.mxu0 0.0
    %187 = vmatprep.subr.mxu0 0.0
    %188 = vmatpush2.msra.mxu0 0.0
    %189 = vmatprep.subr.mxu0 0.0
    %190 = vmatpush2.msra.mxu0 0.0
    %191 = vmatprep.subr.mxu0 0.0
    %192 = vmatpush2.msra.mxu0 0.0
    %193 = vmatprep.subr.mxu0 0.0
    %194 = vmatpush2.msra.mxu0 0.0
    %195 = vmatprep.mubr.f32.mxu0 0.0
    %196 = vmatmul.mubr.f32.gmra.mxu0 %v126
    %v197 = vpop.f32.mrf.mxu0
    %v198 = vadd.f32 %v123, %v197
    %v199 = vpop.f32.mrf.mxu0
    %200 = vmatprep.mubr.f32.mxu0 0.0
    %201 = vmatmul.mubr.f32.gmra.mxu0 %v129
    %v202 = vpop.f32.mrf.mxu0
    %v203 = vadd.f32 %v123, %v202
    %v204 = vpop.f32.mrf.mxu0
    %205 = vdwg.mxu0
    %v206 = vlaneseq
    %v207 = vshrl.u32 %v206, 7
    %v208 = vsub.s32 0, %v207
    %v209 = vrot.slane %v93, %v208
    %214 = vrot.lane.b32.xlu0 %v116, 96
    %v215 = vpop.permute.xlu0 %214
    %216 = vrot.lane.b32.xlu0 %v117, 96
    %v217 = vpop.permute.xlu0 %216
    %218 = vrot.lane.b32.xlu0 %v118, 96
    %v219 = vpop.permute.xlu0 %218
    %220 = vrot.lane.b32.xlu0 %v119, 96
    %v221 = vpop.permute.xlu0 %220
    %v227 = vsel %vm124, %v112, 0
    %v230 = vsel %vm124, %v113, 0
    %v233 = vsel %vm124, %v114, 0
    %v236 = vsel %vm124, %v115, 0
    %238 = vmatprep.subr.mxu0 0.0
    %239 = vmatpush1.msra.mxu0 0.0
    %240 = vmatprep.subr.mxu0 0.0
    %241 = vmatpush1.msra.mxu0 0.0
    %242 = vmatprep.subr.mxu0 0.0
    %243 = vmatpush1.msra.mxu0 0.0
    %244 = vmatprep.subr.mxu0 0.0
    %245 = vmatpush1.msra.mxu0 0.0
    %246 = vmatprep.subr.mxu0 0.0
    %247 = vmatpush1.msra.mxu0 0.0
    %248 = vmatprep.subr.mxu0 0.0
    %249 = vmatpush1.msra.mxu0 0.0
    %250 = vmatprep.subr.mxu0 0.0
    %251 = vmatpush1.msra.mxu0 0.0
    %252 = vmatprep.subr.mxu0 0.0
    %253 = vmatpush1.msra.mxu0 0.0
    %254 = vmatprep.subr.mxu0 0.0
    %255 = vmatpush1.msra.mxu0 0.0
    %256 = vmatprep.subr.mxu0 0.0
    %257 = vmatpush1.msra.mxu0 0.0
    %258 = vmatprep.subr.mxu0 0.0
    %259 = vmatpush1.msra.mxu0 0.0
    %260 = vmatprep.subr.mxu0 0.0
    %261 = vmatpush1.msra.mxu0 0.0
    %262 = vmatprep.subr.mxu0 0.0
    %263 = vmatpush1.msra.mxu0 %v221
    %264 = vmatprep.subr.mxu0 0.0
    %265 = vmatpush1.msra.mxu0 %v219
    %266 = vmatprep.subr.mxu0 0.0
    %267 = vmatpush1.msra.mxu0 %v217
    %268 = vmatprep.subr.mxu0 0.0
    %269 = vmatpush1.msra.mxu0 %v215
    %270 = vmatprep.subr.mxu0 0.0
    %271 = vmatpush2.msra.mxu0 0.0
    %272 = vmatprep.subr.mxu0 0.0
    %273 = vmatpush2.msra.mxu0 0.0
    %274 = vmatprep.subr.mxu0 0.0
    %275 = vmatpush2.msra.mxu0 0.0
    %276 = vmatprep.subr.mxu0 0.0
    %277 = vmatpush2.msra.mxu0 0.0
    %278 = vmatprep.subr.mxu0 0.0
    %279 = vmatpush2.msra.mxu0 0.0
    %280 = vmatprep.subr.mxu0 0.0
    %281 = vmatpush2.msra.mxu0 0.0
    %282 = vmatprep.subr.mxu0 0.0
    %283 = vmatpush2.msra.mxu0 0.0
    %284 = vmatprep.subr.mxu0 0.0
    %285 = vmatpush2.msra.mxu0 0.0
    %286 = vmatprep.subr.mxu0 0.0
    %287 = vmatpush2.msra.mxu0 0.0
    %288 = vmatprep.subr.mxu0 0.0
    %289 = vmatpush2.msra.mxu0 0.0
    %290 = vmatprep.subr.mxu0 0.0
    %291 = vmatpush2.msra.mxu0 0.0
    %292 = vmatprep.subr.mxu0 0.0
    %293 = vmatpush2.msra.mxu0 0.0
    %294 = vmatprep.subr.mxu0 0.0
    %295 = vmatpush2.msra.mxu0 0.0
    %296 = vmatprep.subr.mxu0 0.0
    %297 = vmatpush2.msra.mxu0 0.0
    %298 = vmatprep.subr.mxu0 0.0
    %299 = vmatpush2.msra.mxu0 0.0
    %300 = vmatprep.subr.mxu0 0.0
    %301 = vmatpush2.msra.mxu0 0.0
    %302 = vmatprep.mubr.f32.mxu0 0.0
    %303 = vmatmul.mubr.f32.gmra.mxu0 %v227
    %v304 = vpop.f32.mrf.mxu0
    %v305 = vadd.f32 %v209, %v304
    %v306 = vpop.f32.mrf.mxu0
    %307 = vmatprep.mubr.f32.mxu0 0.0
    %308 = vmatmul.mubr.f32.gmra.mxu0 %v230
    %v309 = vpop.f32.mrf.mxu0
    %v310 = vadd.f32 %v209, %v309
    %v311 = vpop.f32.mrf.mxu0
    %312 = vmatprep.mubr.f32.mxu0 0.0
    %313 = vmatmul.mubr.f32.gmra.mxu0 %v233
    %v314 = vpop.f32.mrf.mxu0
    %v315 = vadd.f32 %v209, %v314
    %v316 = vpop.f32.mrf.mxu0
    %317 = vmatprep.mubr.f32.mxu0 0.0
    %318 = vmatmul.mubr.f32.gmra.mxu0 %v236
    %v319 = vpop.f32.mrf.mxu0
    %v320 = vadd.f32 %v209, %v319
    %v321 = vpop.f32.mrf.mxu0
    %322 = vdwg.mxu0
    %v323 = vlaneseq
    %v324 = vshrl.u32 %v323, 7
    %v325 = vsub.s32 0, %v324
    %v326 = vrot.slane %v94, %v325
    %327 = vrot.lane.b32.xlu0 %v116, 64
    %v328 = vpop.permute.xlu0 %327
    %329 = vrot.lane.b32.xlu0 %v117, 64
    %v330 = vpop.permute.xlu0 %329
    %331 = vrot.lane.b32.xlu0 %v118, 64
    %v332 = vpop.permute.xlu0 %331
    %333 = vrot.lane.b32.xlu0 %v119, 64
    %v334 = vpop.permute.xlu0 %333
    %v340 = vsel %vm124, %v104, 0
    %v343 = vsel %vm124, %v105, 0
    %v346 = vsel %vm124, %v106, 0
    %v349 = vsel %vm124, %v107, 0
    %351 = vmatprep.subr.mxu0 0.0
    %352 = vmatpush1.msra.mxu0 0.0
    %353 = vmatprep.subr.mxu0 0.0
    %354 = vmatpush1.msra.mxu0 0.0
    %355 = vmatprep.subr.mxu0 0.0
    %356 = vmatpush1.msra.mxu0 0.0
    %357 = vmatprep.subr.mxu0 0.0
    %358 = vmatpush1.msra.mxu0 0.0
    %359 = vmatprep.subr.mxu0 0.0
    %360 = vmatpush1.msra.mxu0 0.0
    %361 = vmatprep.subr.mxu0 0.0
    %362 = vmatpush1.msra.mxu0 0.0
    %363 = vmatprep.subr.mxu0 0.0
    %364 = vmatpush1.msra.mxu0 0.0
    %365 = vmatprep.subr.mxu0 0.0
    %366 = vmatpush1.msra.mxu0 0.0
    %367 = vmatprep.subr.mxu0 0.0
    %368 = vmatpush1.msra.mxu0 0.0
    %369 = vmatprep.subr.mxu0 0.0
    %370 = vmatpush1.msra.mxu0 0.0
    %371 = vmatprep.subr.mxu0 0.0
    %372 = vmatpush1.msra.mxu0 0.0
    %373 = vmatprep.subr.mxu0 0.0
    %374 = vmatpush1.msra.mxu0 0.0
    %375 = vmatprep.subr.mxu0 0.0
    %376 = vmatpush1.msra.mxu0 %v334
    %377 = vmatprep.subr.mxu0 0.0
    %378 = vmatpush1.msra.mxu0 %v332
    %379 = vmatprep.subr.mxu0 0.0
    %380 = vmatpush1.msra.mxu0 %v330
    %381 = vmatprep.subr.mxu0 0.0
    %382 = vmatpush1.msra.mxu0 %v328
    %383 = vmatprep.subr.mxu0 0.0
    %384 = vmatpush2.msra.mxu0 0.0
    %385 = vmatprep.subr.mxu0 0.0
    %386 = vmatpush2.msra.mxu0 0.0
    %387 = vmatprep.subr.mxu0 0.0
    %388 = vmatpush2.msra.mxu0 0.0
    %389 = vmatprep.subr.mxu0 0.0
    %390 = vmatpush2.msra.mxu0 0.0
    %391 = vmatprep.subr.mxu0 0.0
    %392 = vmatpush2.msra.mxu0 0.0
    %393 = vmatprep.subr.mxu0 0.0
    %394 = vmatpush2.msra.mxu0 0.0
    %395 = vmatprep.subr.mxu0 0.0
    %396 = vmatpush2.msra.mxu0 0.0
    %397 = vmatprep.subr.mxu0 0.0
    %398 = vmatpush2.msra.mxu0 0.0
    %399 = vmatprep.subr.mxu0 0.0
    %400 = vmatpush2.msra.mxu0 0.0
    %401 = vmatprep.subr.mxu0 0.0
    %402 = vmatpush2.msra.mxu0 0.0
    %403 = vmatprep.subr.mxu0 0.0
    %404 = vmatpush2.msra.mxu0 0.0
    %405 = vmatprep.subr.mxu0 0.0
    %406 = vmatpush2.msra.mxu0 0.0
    %407 = vmatprep.subr.mxu0 0.0
    %408 = vmatpush2.msra.mxu0 0.0
    %409 = vmatprep.subr.mxu0 0.0
    %410 = vmatpush2.msra.mxu0 0.0
    %411 = vmatprep.subr.mxu0 0.0
    %412 = vmatpush2.msra.mxu0 0.0
    %413 = vmatprep.subr.mxu0 0.0
    %414 = vmatpush2.msra.mxu0 0.0
    %415 = vmatprep.mubr.f32.mxu0 0.0
    %416 = vmatmul.mubr.f32.gmra.mxu0 %v340
    %v417 = vpop.f32.mrf.mxu0
    %v418 = vadd.f32 %v326, %v417
    %v419 = vpop.f32.mrf.mxu0
    %420 = vmatprep.mubr.f32.mxu0 0.0
    %421 = vmatmul.mubr.f32.gmra.mxu0 %v343
    %v422 = vpop.f32.mrf.mxu0
    %v423 = vadd.f32 %v326, %v422
    %v424 = vpop.f32.mrf.mxu0
    %425 = vmatprep.mubr.f32.mxu0 0.0
    %426 = vmatmul.mubr.f32.gmra.mxu0 %v346
    %v427 = vpop.f32.mrf.mxu0
    %v428 = vadd.f32 %v326, %v427
    %v429 = vpop.f32.mrf.mxu0
    %430 = vmatprep.mubr.f32.mxu0 0.0
    %431 = vmatmul.mubr.f32.gmra.mxu0 %v349
    %v432 = vpop.f32.mrf.mxu0
    %v433 = vadd.f32 %v326, %v432
    %v434 = vpop.f32.mrf.mxu0
    %435 = vdwg.mxu0
    %v436 = vlaneseq
    %v437 = vshrl.u32 %v436, 7
    %v438 = vadd.s32 %v437, 8
    %vm439 = vcmp.lt.s32.totalorder %v437, 0
    %v440 = vsub.s32 0, %v437
    %v441 = vsel %vm439, %v440, %v437
    %v442 = vshrl.u32 %v441, 1
    %v443 = vand.u32 %v441, 1
    %v444 = vsub.s32 0, %v443
    %v445 = vsel %vm439, %v444, %v443
    %vm446 = vcmp.lt.s32.totalorder %v438, 0
    %v447 = vsub.s32 0, %v438
    %v448 = vsel %vm446, %v447, %v438
    %v449 = vshrl.u32 %v448, 1
    %v450 = vand.u32 %v448, 1
    %v451 = vsub.s32 0, %v450
    %v452 = vsel %vm446, %v451, %v450
    %vm453 = vcmp.ne.s32.totalorder %v445, 0
    %vm454 = vcmp.ne.s32.totalorder %v452, 0
    %vm455 = vcmp.lt.s32.totalorder %v445, 0
    %vm456 = vcmp.lt.s32.totalorder %v452, 0
    %vm457 = vmand %vm455, %vm453
    %vm458 = vmand %vm456, %vm454
    %v459 = vadd.s32 %v445, 2
    %v460 = vadd.s32 %v452, 2
    %v461 = vsel %vm457, %v459, %v445
    %v462 = vsel %vm458, %v460, %v452
    %v463 = vlaneseq
    %v464 = vand.u32 %v463, 127
    %vm465 = vcmp.lt.s32.totalorder %v464, 0
    %v466 = vsub.s32 0, %v464
    %v467 = vsel %vm465, %v466, %v464
    %v468 = vshrl.u32 %v467, 1
    %v469 = vand.u32 %v467, 1
    %v470 = vsub.s32 0, %v469
    %v471 = vsel %vm465, %v470, %v469
    %vm472 = vcmp.ne.s32.totalorder %v471, 0
    %vm473 = vcmp.lt.s32.totalorder %v471, 0
    %vm474 = vmand %vm473, %vm472
    %v475 = vadd.s32 %v471, 2
    %v476 = vsel %vm474, %v475, %v471
    %vm477 = vcmp.eq.s32.totalorder %v461, %v476
    %vm478 = vcmp.eq.s32.totalorder %v462, %v476
    %vm479 = vcmask 64512
    %v481 = vsel %vm479, %v198, 0
    %v484 = vsel %vm479, %v203, 0
    %v487 = vsel %vm479, %v305, 0
    %v490 = vsel %vm479, %v310, 0
    %v493 = vsel %vm479, %v315, 0
    %v496 = vsel %vm479, %v320, 0
    %498 = vmatprep.subr.mxu0 0.0
    %499 = vmatpush1.xpose.msra.mxu0 0.0
    %500 = vmatprep.subr.mxu0 0.0
    %501 = vmatpush1.xpose.msra.mxu0 0.0
    %502 = vmatprep.subr.mxu0 0.0
    %503 = vmatpush1.xpose.msra.mxu0 0.0
    %504 = vmatprep.subr.mxu0 0.0
    %505 = vmatpush1.xpose.msra.mxu0 0.0
    %506 = vmatprep.subr.mxu0 0.0
    %507 = vmatpush1.xpose.msra.mxu0 0.0
    %508 = vmatprep.subr.mxu0 0.0
    %509 = vmatpush1.xpose.msra.mxu0 0.0
    %510 = vmatprep.subr.mxu0 0.0
    %511 = vmatpush1.xpose.msra.mxu0 0.0
    %512 = vmatprep.subr.mxu0 0.0
    %513 = vmatpush1.xpose.msra.mxu0 0.0
    %514 = vmatprep.subr.mxu0 0.0
    %515 = vmatpush1.xpose.msra.mxu0 0.0
    %516 = vmatprep.subr.mxu0 0.0
    %517 = vmatpush1.xpose.msra.mxu0 0.0
    %518 = vmatprep.subr.mxu0 0.0
    %519 = vmatpush1.xpose.msra.mxu0 0.0
    %520 = vmatprep.subr.mxu0 0.0
    %521 = vmatpush1.xpose.msra.mxu0 0.0
    %522 = vmatprep.subr.mxu0 0.0
    %523 = vmatpush1.xpose.msra.mxu0 %v496
    %524 = vmatprep.subr.mxu0 0.0
    %525 = vmatpush1.xpose.msra.mxu0 %v493
    %526 = vmatprep.subr.mxu0 0.0
    %527 = vmatpush1.xpose.msra.mxu0 %v490
    %528 = vmatprep.subr.mxu0 0.0
    %529 = vmatpush1.xpose.msra.mxu0 %v487
    %530 = vmatprep.subr.mxu0 0.0
    %531 = vmatpush2.xpose.msra.mxu0 0.0
    %532 = vmatprep.subr.mxu0 0.0
    %533 = vmatpush2.xpose.msra.mxu0 0.0
    %534 = vmatprep.subr.mxu0 0.0
    %535 = vmatpush2.xpose.msra.mxu0 0.0
    %536 = vmatprep.subr.mxu0 0.0
    %537 = vmatpush2.xpose.msra.mxu0 0.0
    %538 = vmatprep.subr.mxu0 0.0
    %539 = vmatpush2.xpose.msra.mxu0 0.0
    %540 = vmatprep.subr.mxu0 0.0
    %541 = vmatpush2.xpose.msra.mxu0 0.0
    %542 = vmatprep.subr.mxu0 0.0
    %543 = vmatpush2.xpose.msra.mxu0 0.0
    %544 = vmatprep.subr.mxu0 0.0
    %545 = vmatpush2.xpose.msra.mxu0 0.0
    %546 = vmatprep.subr.mxu0 0.0
    %547 = vmatpush2.xpose.msra.mxu0 0.0
    %548 = vmatprep.subr.mxu0 0.0
    %549 = vmatpush2.xpose.msra.mxu0 0.0
    %550 = vmatprep.subr.mxu0 0.0
    %551 = vmatpush2.xpose.msra.mxu0 0.0
    %552 = vmatprep.subr.mxu0 0.0
    %553 = vmatpush2.xpose.msra.mxu0 0.0
    %554 = vmatprep.subr.mxu0 0.0
    %555 = vmatpush2.xpose.msra.mxu0 0.0
    %556 = vmatprep.subr.mxu0 0.0
    %557 = vmatpush2.xpose.msra.mxu0 0.0
    %558 = vmatprep.subr.mxu0 0.0
    %559 = vmatpush2.xpose.msra.mxu0 0.0
    %560 = vmatprep.subr.mxu0 0.0
    %561 = vmatpush2.xpose.msra.mxu0 0.0
    %562 = vmatprep.mubr.f32.mxu0 0.0
    %563 = vmatmul.mubr.f32.gmra.mxu0 %v481
    %v564 = vpop.f32.mrf.mxu0
    %v565 = vadd.f32 0.0, %v564
    %v566 = vpop.f32.mrf.mxu0
    %567 = vmatprep.mubr.f32.mxu0 0.0
    %568 = vmatmul.mubr.f32.gmra.mxu0 %v484
    %v569 = vpop.f32.mrf.mxu0
    %v570 = vadd.f32 0.0, %v569
    %v571 = vpop.f32.mrf.mxu0
    %572 = vdwg.mxu0
    %v573 = vsel %vm477, %v565, -1e+30
    %v574 = vsel %vm478, %v570, -1e+30
    %v575 = vsel %vm124, %v573, -inf
    %576 = vmax.xlane.f32.xlu0 %v575
    %v577 = vpop.xlane.xlu0 %576
    %v578 = vsel %vm124, %v574, -inf
    %579 = vmax.xlane.f32.xlu0 %v578
    %v580 = vpop.xlane.xlu0 %579
    %v581 = vsub.f32 %v573, %v577
    %v582 = vsub.f32 %v574, %v580
    %v583 = vmul.f32 %v581, 1.442695
    %v584 = vpow.pop %v583
    %v585 = vmul.f32 %v582, 1.442695
    %v586 = vpow.pop %v585
    %v587 = vsel %vm124, %v584, 0.0
    %588 = vadd.xlane.f32.xlu0 %v587
    %v589 = vpop.xlane.xlu0 %588
    %v590 = vsel %vm124, %v586, 0.0
    %591 = vadd.xlane.f32.xlu0 %v590
    %v592 = vpop.xlane.xlu0 %591
    %v593 = vrcp.pop %v589
    %v594 = vrcp.pop %v592
    %v595 = vmul.f32 %v584, %v593
    %v596 = vmul.f32 %v586, %v594
    %v598 = vsel %vm124, %v595, 0
    %v601 = vsel %vm124, %v596, 0
    %603 = vmatprep.subr.mxu0 0.0
    %604 = vmatpush1.msra.mxu0 0.0
    %605 = vmatprep.subr.mxu0 0.0
    %606 = vmatpush1.msra.mxu0 0.0
    %607 = vmatprep.subr.mxu0 0.0
    %608 = vmatpush1.msra.mxu0 0.0
    %609 = vmatprep.subr.mxu0 0.0
    %610 = vmatpush1.msra.mxu0 0.0
    %611 = vmatprep.subr.mxu0 0.0
    %612 = vmatpush1.msra.mxu0 0.0
    %613 = vmatprep.subr.mxu0 0.0
    %614 = vmatpush1.msra.mxu0 0.0
    %615 = vmatprep.subr.mxu0 0.0
    %616 = vmatpush1.msra.mxu0 0.0
    %617 = vmatprep.subr.mxu0 0.0
    %618 = vmatpush1.msra.mxu0 0.0
    %619 = vmatprep.subr.mxu0 0.0
    %620 = vmatpush1.msra.mxu0 0.0
    %621 = vmatprep.subr.mxu0 0.0
    %622 = vmatpush1.msra.mxu0 0.0
    %623 = vmatprep.subr.mxu0 0.0
    %624 = vmatpush1.msra.mxu0 0.0
    %625 = vmatprep.subr.mxu0 0.0
    %626 = vmatpush1.msra.mxu0 0.0
    %627 = vmatprep.subr.mxu0 0.0
    %628 = vmatpush1.msra.mxu0 %v433
    %629 = vmatprep.subr.mxu0 0.0
    %630 = vmatpush1.msra.mxu0 %v428
    %631 = vmatprep.subr.mxu0 0.0
    %632 = vmatpush1.msra.mxu0 %v423
    %633 = vmatprep.subr.mxu0 0.0
    %634 = vmatpush1.msra.mxu0 %v418
    %635 = vmatprep.subr.mxu0 0.0
    %636 = vmatpush2.msra.mxu0 0.0
    %637 = vmatprep.subr.mxu0 0.0
    %638 = vmatpush2.msra.mxu0 0.0
    %639 = vmatprep.subr.mxu0 0.0
    %640 = vmatpush2.msra.mxu0 0.0
    %641 = vmatprep.subr.mxu0 0.0
    %642 = vmatpush2.msra.mxu0 0.0
    %643 = vmatprep.subr.mxu0 0.0
    %644 = vmatpush2.msra.mxu0 0.0
    %645 = vmatprep.subr.mxu0 0.0
    %646 = vmatpush2.msra.mxu0 0.0
    %647 = vmatprep.subr.mxu0 0.0
    %648 = vmatpush2.msra.mxu0 0.0
    %649 = vmatprep.subr.mxu0 0.0
    %650 = vmatpush2.msra.mxu0 0.0
    %651 = vmatprep.subr.mxu0 0.0
    %652 = vmatpush2.msra.mxu0 0.0
    %653 = vmatprep.subr.mxu0 0.0
    %654 = vmatpush2.msra.mxu0 0.0
    %655 = vmatprep.subr.mxu0 0.0
    %656 = vmatpush2.msra.mxu0 0.0
    %657 = vmatprep.subr.mxu0 0.0
    %658 = vmatpush2.msra.mxu0 0.0
    %659 = vmatprep.subr.mxu0 0.0
    %660 = vmatpush2.msra.mxu0 0.0
    %661 = vmatprep.subr.mxu0 0.0
    %662 = vmatpush2.msra.mxu0 0.0
    %663 = vmatprep.subr.mxu0 0.0
    %664 = vmatpush2.msra.mxu0 0.0
    %665 = vmatprep.subr.mxu0 0.0
    %666 = vmatpush2.msra.mxu0 0.0
    %667 = vmatprep.mubr.f32.mxu0 0.0
    %668 = vmatmul.mubr.f32.gmra.mxu0 %v598
    %v669 = vpop.f32.mrf.mxu0
    %v670 = vadd.f32 0.0, %v669
    %v671 = vpop.f32.mrf.mxu0
    %672 = vmatprep.mubr.f32.mxu0 0.0
    %673 = vmatmul.mubr.f32.gmra.mxu0 %v601
    %v674 = vpop.f32.mrf.mxu0
    %v675 = vadd.f32 0.0, %v674
    %v676 = vpop.f32.mrf.mxu0
    %677 = vdwg.mxu0
    %678 = vrot.lane.b32.xlu0 %v198, 120
    %v679 = vpop.permute.xlu0 %678
    %680 = vrot.lane.b32.xlu0 %v203, 120
    %v681 = vpop.permute.xlu0 %680
    %682 = vrot.lane.b32.xlu0 %v305, 120
    %v683 = vpop.permute.xlu0 %682
    %684 = vrot.lane.b32.xlu0 %v310, 120
    %v685 = vpop.permute.xlu0 %684
    %686 = vrot.lane.b32.xlu0 %v315, 120
    %v687 = vpop.permute.xlu0 %686
    %688 = vrot.lane.b32.xlu0 %v320, 120
    %v689 = vpop.permute.xlu0 %688
    %v690 = vsel %vm479, %v679, 0
    %v692 = vsel %vm479, %v681, 0
    %v694 = vsel %vm479, %v683, 0
    %v696 = vsel %vm479, %v685, 0
    %v698 = vsel %vm479, %v687, 0
    %v700 = vsel %vm479, %v689, 0
    %702 = vmatprep.subr.mxu0 0.0
    %703 = vmatpush1.xpose.msra.mxu0 0.0
    %704 = vmatprep.subr.mxu0 0.0
    %705 = vmatpush1.xpose.msra.mxu0 0.0
    %706 = vmatprep.subr.mxu0 0.0
    %707 = vmatpush1.xpose.msra.mxu0 0.0
    %708 = vmatprep.subr.mxu0 0.0
    %709 = vmatpush1.xpose.msra.mxu0 0.0
    %710 = vmatprep.subr.mxu0 0.0
    %711 = vmatpush1.xpose.msra.mxu0 0.0
    %712 = vmatprep.subr.mxu0 0.0
    %713 = vmatpush1.xpose.msra.mxu0 0.0
    %714 = vmatprep.subr.mxu0 0.0
    %715 = vmatpush1.xpose.msra.mxu0 0.0
    %716 = vmatprep.subr.mxu0 0.0
    %717 = vmatpush1.xpose.msra.mxu0 0.0
    %718 = vmatprep.subr.mxu0 0.0
    %719 = vmatpush1.xpose.msra.mxu0 0.0
    %720 = vmatprep.subr.mxu0 0.0
    %721 = vmatpush1.xpose.msra.mxu0 0.0
    %722 = vmatprep.subr.mxu0 0.0
    %723 = vmatpush1.xpose.msra.mxu0 0.0
    %724 = vmatprep.subr.mxu0 0.0
    %725 = vmatpush1.xpose.msra.mxu0 0.0
    %726 = vmatprep.subr.mxu0 0.0
    %727 = vmatpush1.xpose.msra.mxu0 %v700
    %728 = vmatprep.subr.mxu0 0.0
    %729 = vmatpush1.xpose.msra.mxu0 %v698
    %730 = vmatprep.subr.mxu0 0.0
    %731 = vmatpush1.xpose.msra.mxu0 %v696
    %732 = vmatprep.subr.mxu0 0.0
    %733 = vmatpush1.xpose.msra.mxu0 %v694
    %734 = vmatprep.subr.mxu0 0.0
    %735 = vmatpush2.xpose.msra.mxu0 0.0
    %736 = vmatprep.subr.mxu0 0.0
    %737 = vmatpush2.xpose.msra.mxu0 0.0
    %738 = vmatprep.subr.mxu0 0.0
    %739 = vmatpush2.xpose.msra.mxu0 0.0
    %740 = vmatprep.subr.mxu0 0.0
    %741 = vmatpush2.xpose.msra.mxu0 0.0
    %742 = vmatprep.subr.mxu0 0.0
    %743 = vmatpush2.xpose.msra.mxu0 0.0
    %744 = vmatprep.subr.mxu0 0.0
    %745 = vmatpush2.xpose.msra.mxu0 0.0
    %746 = vmatprep.subr.mxu0 0.0
    %747 = vmatpush2.xpose.msra.mxu0 0.0
    %748 = vmatprep.subr.mxu0 0.0
    %749 = vmatpush2.xpose.msra.mxu0 0.0
    %750 = vmatprep.subr.mxu0 0.0
    %751 = vmatpush2.xpose.msra.mxu0 0.0
    %752 = vmatprep.subr.mxu0 0.0
    %753 = vmatpush2.xpose.msra.mxu0 0.0
    %754 = vmatprep.subr.mxu0 0.0
    %755 = vmatpush2.xpose.msra.mxu0 0.0
    %756 = vmatprep.subr.mxu0 0.0
    %757 = vmatpush2.xpose.msra.mxu0 0.0
    %758 = vmatprep.subr.mxu0 0.0
    %759 = vmatpush2.xpose.msra.mxu0 0.0
    %760 = vmatprep.subr.mxu0 0.0
    %761 = vmatpush2.xpose.msra.mxu0 0.0
    %762 = vmatprep.subr.mxu0 0.0
    %763 = vmatpush2.xpose.msra.mxu0 0.0
    %764 = vmatprep.subr.mxu0 0.0
    %765 = vmatpush2.xpose.msra.mxu0 0.0
    %766 = vmatprep.mubr.f32.mxu0 0.0
    %767 = vmatmul.mubr.f32.gmra.mxu0 %v690
    %v768 = vpop.f32.mrf.mxu0
    %v769 = vadd.f32 0.0, %v768
    %v770 = vpop.f32.mrf.mxu0
    %771 = vmatprep.mubr.f32.mxu0 0.0
    %772 = vmatmul.mubr.f32.gmra.mxu0 %v692
    %v773 = vpop.f32.mrf.mxu0
    %v774 = vadd.f32 0.0, %v773
    %v775 = vpop.f32.mrf.mxu0
    %776 = vdwg.mxu0
    %v777 = vsel %vm477, %v769, -1e+30
    %v778 = vsel %vm478, %v774, -1e+30
    %v779 = vsel %vm124, %v777, -inf
    %780 = vmax.xlane.f32.xlu0 %v779
    %v781 = vpop.xlane.xlu0 %780
    %v782 = vsel %vm124, %v778, -inf
    %783 = vmax.xlane.f32.xlu0 %v782
    %v784 = vpop.xlane.xlu0 %783
    %v785 = vsub.f32 %v777, %v781
    %v786 = vsub.f32 %v778, %v784
    %v787 = vmul.f32 %v785, 1.442695
    %v788 = vpow.pop %v787
    %v789 = vmul.f32 %v786, 1.442695
    %v790 = vpow.pop %v789
    %v791 = vsel %vm124, %v788, 0.0
    %792 = vadd.xlane.f32.xlu0 %v791
    %v793 = vpop.xlane.xlu0 %792
    %v794 = vsel %vm124, %v790, 0.0
    %795 = vadd.xlane.f32.xlu0 %v794
    %v796 = vpop.xlane.xlu0 %795
    %v797 = vrcp.pop %v793
    %v798 = vrcp.pop %v796
    %v799 = vmul.f32 %v788, %v797
    %v800 = vmul.f32 %v790, %v798
    %805 = vrot.lane.b32.xlu0 %v418, 120
    %v806 = vpop.permute.xlu0 %805
    %807 = vrot.lane.b32.xlu0 %v423, 120
    %v808 = vpop.permute.xlu0 %807
    %809 = vrot.lane.b32.xlu0 %v428, 120
    %v810 = vpop.permute.xlu0 %809
    %811 = vrot.lane.b32.xlu0 %v433, 120
    %v812 = vpop.permute.xlu0 %811
    %v818 = vsel %vm124, %v799, 0
    %v821 = vsel %vm124, %v800, 0
    %823 = vmatprep.subr.mxu0 0.0
    %824 = vmatpush1.msra.mxu0 0.0
    %825 = vmatprep.subr.mxu0 0.0
    %826 = vmatpush1.msra.mxu0 0.0
    %827 = vmatprep.subr.mxu0 0.0
    %828 = vmatpush1.msra.mxu0 0.0
    %829 = vmatprep.subr.mxu0 0.0
    %830 = vmatpush1.msra.mxu0 0.0
    %831 = vmatprep.subr.mxu0 0.0
    %832 = vmatpush1.msra.mxu0 0.0
    %833 = vmatprep.subr.mxu0 0.0
    %834 = vmatpush1.msra.mxu0 0.0
    %835 = vmatprep.subr.mxu0 0.0
    %836 = vmatpush1.msra.mxu0 0.0
    %837 = vmatprep.subr.mxu0 0.0
    %838 = vmatpush1.msra.mxu0 0.0
    %839 = vmatprep.subr.mxu0 0.0
    %840 = vmatpush1.msra.mxu0 0.0
    %841 = vmatprep.subr.mxu0 0.0
    %842 = vmatpush1.msra.mxu0 0.0
    %843 = vmatprep.subr.mxu0 0.0
    %844 = vmatpush1.msra.mxu0 0.0
    %845 = vmatprep.subr.mxu0 0.0
    %846 = vmatpush1.msra.mxu0 0.0
    %847 = vmatprep.subr.mxu0 0.0
    %848 = vmatpush1.msra.mxu0 %v812
    %849 = vmatprep.subr.mxu0 0.0
    %850 = vmatpush1.msra.mxu0 %v810
    %851 = vmatprep.subr.mxu0 0.0
    %852 = vmatpush1.msra.mxu0 %v808
    %853 = vmatprep.subr.mxu0 0.0
    %854 = vmatpush1.msra.mxu0 %v806
    %855 = vmatprep.subr.mxu0 0.0
    %856 = vmatpush2.msra.mxu0 0.0
    %857 = vmatprep.subr.mxu0 0.0
    %858 = vmatpush2.msra.mxu0 0.0
    %859 = vmatprep.subr.mxu0 0.0
    %860 = vmatpush2.msra.mxu0 0.0
    %861 = vmatprep.subr.mxu0 0.0
    %862 = vmatpush2.msra.mxu0 0.0
    %863 = vmatprep.subr.mxu0 0.0
    %864 = vmatpush2.msra.mxu0 0.0
    %865 = vmatprep.subr.mxu0 0.0
    %866 = vmatpush2.msra.mxu0 0.0
    %867 = vmatprep.subr.mxu0 0.0
    %868 = vmatpush2.msra.mxu0 0.0
    %869 = vmatprep.subr.mxu0 0.0
    %870 = vmatpush2.msra.mxu0 0.0
    %871 = vmatprep.subr.mxu0 0.0
    %872 = vmatpush2.msra.mxu0 0.0
    %873 = vmatprep.subr.mxu0 0.0
    %874 = vmatpush2.msra.mxu0 0.0
    %875 = vmatprep.subr.mxu0 0.0
    %876 = vmatpush2.msra.mxu0 0.0
    %877 = vmatprep.subr.mxu0 0.0
    %878 = vmatpush2.msra.mxu0 0.0
    %879 = vmatprep.subr.mxu0 0.0
    %880 = vmatpush2.msra.mxu0 0.0
    %881 = vmatprep.subr.mxu0 0.0
    %882 = vmatpush2.msra.mxu0 0.0
    %883 = vmatprep.subr.mxu0 0.0
    %884 = vmatpush2.msra.mxu0 0.0
    %885 = vmatprep.subr.mxu0 0.0
    %886 = vmatpush2.msra.mxu0 0.0
    %887 = vmatprep.mubr.f32.mxu0 0.0
    %888 = vmatmul.mubr.f32.gmra.mxu0 %v818
    %v889 = vpop.f32.mrf.mxu0
    %v890 = vadd.f32 0.0, %v889
    %v891 = vpop.f32.mrf.mxu0
    %892 = vmatprep.mubr.f32.mxu0 0.0
    %893 = vmatmul.mubr.f32.gmra.mxu0 %v821
    %v894 = vpop.f32.mrf.mxu0
    %v895 = vadd.f32 0.0, %v894
    %v896 = vpop.f32.mrf.mxu0
    %897 = vdwg.mxu0
    %898 = vrot.lane.b32.xlu0 %v198, 112
    %v899 = vpop.permute.xlu0 %898
    %900 = vrot.lane.b32.xlu0 %v203, 112
    %v901 = vpop.permute.xlu0 %900
    %902 = vrot.lane.b32.xlu0 %v305, 112
    %v903 = vpop.permute.xlu0 %902
    %904 = vrot.lane.b32.xlu0 %v310, 112
    %v905 = vpop.permute.xlu0 %904
    %906 = vrot.lane.b32.xlu0 %v315, 112
    %v907 = vpop.permute.xlu0 %906
    %908 = vrot.lane.b32.xlu0 %v320, 112
    %v909 = vpop.permute.xlu0 %908
    %v910 = vsel %vm479, %v899, 0
    %v912 = vsel %vm479, %v901, 0
    %v914 = vsel %vm479, %v903, 0
    %v916 = vsel %vm479, %v905, 0
    %v918 = vsel %vm479, %v907, 0
    %v920 = vsel %vm479, %v909, 0
    %922 = vmatprep.subr.mxu0 0.0
    %923 = vmatpush1.xpose.msra.mxu0 0.0
    %924 = vmatprep.subr.mxu0 0.0
    %925 = vmatpush1.xpose.msra.mxu0 0.0
    %926 = vmatprep.subr.mxu0 0.0
    %927 = vmatpush1.xpose.msra.mxu0 0.0
    %928 = vmatprep.subr.mxu0 0.0
    %929 = vmatpush1.xpose.msra.mxu0 0.0
    %930 = vmatprep.subr.mxu0 0.0
    %931 = vmatpush1.xpose.msra.mxu0 0.0
    %932 = vmatprep.subr.mxu0 0.0
    %933 = vmatpush1.xpose.msra.mxu0 0.0
    %934 = vmatprep.subr.mxu0 0.0
    %935 = vmatpush1.xpose.msra.mxu0 0.0
    %936 = vmatprep.subr.mxu0 0.0
    %937 = vmatpush1.xpose.msra.mxu0 0.0
    %938 = vmatprep.subr.mxu0 0.0
    %939 = vmatpush1.xpose.msra.mxu0 0.0
    %940 = vmatprep.subr.mxu0 0.0
    %941 = vmatpush1.xpose.msra.mxu0 0.0
    %942 = vmatprep.subr.mxu0 0.0
    %943 = vmatpush1.xpose.msra.mxu0 0.0
    %944 = vmatprep.subr.mxu0 0.0
    %945 = vmatpush1.xpose.msra.mxu0 0.0
    %946 = vmatprep.subr.mxu0 0.0
    %947 = vmatpush1.xpose.msra.mxu0 %v920
    %948 = vmatprep.subr.mxu0 0.0
    %949 = vmatpush1.xpose.msra.mxu0 %v918
    %950 = vmatprep.subr.mxu0 0.0
    %951 = vmatpush1.xpose.msra.mxu0 %v916
    %952 = vmatprep.subr.mxu0 0.0
    %953 = vmatpush1.xpose.msra.mxu0 %v914
    %954 = vmatprep.subr.mxu0 0.0
    %955 = vmatpush2.xpose.msra.mxu0 0.0
    %956 = vmatprep.subr.mxu0 0.0
    %957 = vmatpush2.xpose.msra.mxu0 0.0
    %958 = vmatprep.subr.mxu0 0.0
    %959 = vmatpush2.xpose.msra.mxu0 0.0
    %960 = vmatprep.subr.mxu0 0.0
    %961 = vmatpush2.xpose.msra.mxu0 0.0
    %962 = vmatprep.subr.mxu0 0.0
    %963 = vmatpush2.xpose.msra.mxu0 0.0
    %964 = vmatprep.subr.mxu0 0.0
    %965 = vmatpush2.xpose.msra.mxu0 0.0
    %966 = vmatprep.subr.mxu0 0.0
    %967 = vmatpush2.xpose.msra.mxu0 0.0
    %968 = vmatprep.subr.mxu0 0.0
    %969 = vmatpush2.xpose.msra.mxu0 0.0
    %970 = vmatprep.subr.mxu0 0.0
    %971 = vmatpush2.xpose.msra.mxu0 0.0
    %972 = vmatprep.subr.mxu0 0.0
    %973 = vmatpush2.xpose.msra.mxu0 0.0
    %974 = vmatprep.subr.mxu0 0.0
    %975 = vmatpush2.xpose.msra.mxu0 0.0
    %976 = vmatprep.subr.mxu0 0.0
    %977 = vmatpush2.xpose.msra.mxu0 0.0
    %978 = vmatprep.subr.mxu0 0.0
    %979 = vmatpush2.xpose.msra.mxu0 0.0
    %980 = vmatprep.subr.mxu0 0.0
    %981 = vmatpush2.xpose.msra.mxu0 0.0
    %982 = vmatprep.subr.mxu0 0.0
    %983 = vmatpush2.xpose.msra.mxu0 0.0
    %984 = vmatprep.subr.mxu0 0.0
    %985 = vmatpush2.xpose.msra.mxu0 0.0
    %986 = vmatprep.mubr.f32.mxu0 0.0
    %987 = vmatmul.mubr.f32.gmra.mxu0 %v910
    %v988 = vpop.f32.mrf.mxu0
    %v989 = vadd.f32 0.0, %v988
    %v990 = vpop.f32.mrf.mxu0
    %991 = vmatprep.mubr.f32.mxu0 0.0
    %992 = vmatmul.mubr.f32.gmra.mxu0 %v912
    %v993 = vpop.f32.mrf.mxu0
    %v994 = vadd.f32 0.0, %v993
    %v995 = vpop.f32.mrf.mxu0
    %996 = vdwg.mxu0
    %v997 = vsel %vm477, %v989, -1e+30
    %v998 = vsel %vm478, %v994, -1e+30
    %v999 = vsel %vm124, %v997, -inf
    %1000 = vmax.xlane.f32.xlu0 %v999
    %v1001 = vpop.xlane.xlu0 %1000
    %v1002 = vsel %vm124, %v998, -inf
    %1003 = vmax.xlane.f32.xlu0 %v1002
    %v1004 = vpop.xlane.xlu0 %1003
    %v1005 = vsub.f32 %v997, %v1001
    %v1006 = vsub.f32 %v998, %v1004
    %v1007 = vmul.f32 %v1005, 1.442695
    %v1008 = vpow.pop %v1007
    %v1009 = vmul.f32 %v1006, 1.442695
    %v1010 = vpow.pop %v1009
    %v1011 = vsel %vm124, %v1008, 0.0
    %1012 = vadd.xlane.f32.xlu0 %v1011
    %v1013 = vpop.xlane.xlu0 %1012
    %v1014 = vsel %vm124, %v1010, 0.0
    %1015 = vadd.xlane.f32.xlu0 %v1014
    %v1016 = vpop.xlane.xlu0 %1015
    %v1017 = vrcp.pop %v1013
    %v1018 = vrcp.pop %v1016
    %v1019 = vmul.f32 %v1008, %v1017
    %v1020 = vmul.f32 %v1010, %v1018
    %1021 = vrot.lane.b32.xlu0 %v418, 112
    %v1022 = vpop.permute.xlu0 %1021
    %1023 = vrot.lane.b32.xlu0 %v423, 112
    %v1024 = vpop.permute.xlu0 %1023
    %1025 = vrot.lane.b32.xlu0 %v428, 112
    %v1026 = vpop.permute.xlu0 %1025
    %1027 = vrot.lane.b32.xlu0 %v433, 112
    %v1028 = vpop.permute.xlu0 %1027
    %v1034 = vsel %vm124, %v1019, 0
    %v1037 = vsel %vm124, %v1020, 0
    %1039 = vmatprep.subr.mxu0 0.0
    %1040 = vmatpush1.msra.mxu0 0.0
    %1041 = vmatprep.subr.mxu0 0.0
    %1042 = vmatpush1.msra.mxu0 0.0
    %1043 = vmatprep.subr.mxu0 0.0
    %1044 = vmatpush1.msra.mxu0 0.0
    %1045 = vmatprep.subr.mxu0 0.0
    %1046 = vmatpush1.msra.mxu0 0.0
    %1047 = vmatprep.subr.mxu0 0.0
    %1048 = vmatpush1.msra.mxu0 0.0
    %1049 = vmatprep.subr.mxu0 0.0
    %1050 = vmatpush1.msra.mxu0 0.0
    %1051 = vmatprep.subr.mxu0 0.0
    %1052 = vmatpush1.msra.mxu0 0.0
    %1053 = vmatprep.subr.mxu0 0.0
    %1054 = vmatpush1.msra.mxu0 0.0
    %1055 = vmatprep.subr.mxu0 0.0
    %1056 = vmatpush1.msra.mxu0 0.0
    %1057 = vmatprep.subr.mxu0 0.0
    %1058 = vmatpush1.msra.mxu0 0.0
    %1059 = vmatprep.subr.mxu0 0.0
    %1060 = vmatpush1.msra.mxu0 0.0
    %1061 = vmatprep.subr.mxu0 0.0
    %1062 = vmatpush1.msra.mxu0 0.0
    %1063 = vmatprep.subr.mxu0 0.0
    %1064 = vmatpush1.msra.mxu0 %v1028
    %1065 = vmatprep.subr.mxu0 0.0
    %1066 = vmatpush1.msra.mxu0 %v1026
    %1067 = vmatprep.subr.mxu0 0.0
    %1068 = vmatpush1.msra.mxu0 %v1024
    %1069 = vmatprep.subr.mxu0 0.0
    %1070 = vmatpush1.msra.mxu0 %v1022
    %1071 = vmatprep.subr.mxu0 0.0
    %1072 = vmatpush2.msra.mxu0 0.0
    %1073 = vmatprep.subr.mxu0 0.0
    %1074 = vmatpush2.msra.mxu0 0.0
    %1075 = vmatprep.subr.mxu0 0.0
    %1076 = vmatpush2.msra.mxu0 0.0
    %1077 = vmatprep.subr.mxu0 0.0
    %1078 = vmatpush2.msra.mxu0 0.0
    %1079 = vmatprep.subr.mxu0 0.0
    %1080 = vmatpush2.msra.mxu0 0.0
    %1081 = vmatprep.subr.mxu0 0.0
    %1082 = vmatpush2.msra.mxu0 0.0
    %1083 = vmatprep.subr.mxu0 0.0
    %1084 = vmatpush2.msra.mxu0 0.0
    %1085 = vmatprep.subr.mxu0 0.0
    %1086 = vmatpush2.msra.mxu0 0.0
    %1087 = vmatprep.subr.mxu0 0.0
    %1088 = vmatpush2.msra.mxu0 0.0
    %1089 = vmatprep.subr.mxu0 0.0
    %1090 = vmatpush2.msra.mxu0 0.0
    %1091 = vmatprep.subr.mxu0 0.0
    %1092 = vmatpush2.msra.mxu0 0.0
    %1093 = vmatprep.subr.mxu0 0.0
    %1094 = vmatpush2.msra.mxu0 0.0
    %1095 = vmatprep.subr.mxu0 0.0
    %1096 = vmatpush2.msra.mxu0 0.0
    %1097 = vmatprep.subr.mxu0 0.0
    %1098 = vmatpush2.msra.mxu0 0.0
    %1099 = vmatprep.subr.mxu0 0.0
    %1100 = vmatpush2.msra.mxu0 0.0
    %1101 = vmatprep.subr.mxu0 0.0
    %1102 = vmatpush2.msra.mxu0 0.0
    %1103 = vmatprep.mubr.f32.mxu0 0.0
    %1104 = vmatmul.mubr.f32.gmra.mxu0 %v1034
    %v1105 = vpop.f32.mrf.mxu0
    %v1106 = vadd.f32 0.0, %v1105
    %v1107 = vpop.f32.mrf.mxu0
    %1108 = vmatprep.mubr.f32.mxu0 0.0
    %1109 = vmatmul.mubr.f32.gmra.mxu0 %v1037
    %v1110 = vpop.f32.mrf.mxu0
    %v1111 = vadd.f32 0.0, %v1110
    %v1112 = vpop.f32.mrf.mxu0
    %1113 = vdwg.mxu0
    %1114 = vrot.lane.b32.xlu0 %v198, 104
    %v1115 = vpop.permute.xlu0 %1114
    %1116 = vrot.lane.b32.xlu0 %v203, 104
    %v1117 = vpop.permute.xlu0 %1116
    %1118 = vrot.lane.b32.xlu0 %v305, 104
    %v1119 = vpop.permute.xlu0 %1118
    %1120 = vrot.lane.b32.xlu0 %v310, 104
    %v1121 = vpop.permute.xlu0 %1120
    %1122 = vrot.lane.b32.xlu0 %v315, 104
    %v1123 = vpop.permute.xlu0 %1122
    %1124 = vrot.lane.b32.xlu0 %v320, 104
    %v1125 = vpop.permute.xlu0 %1124
    %v1126 = vsel %vm479, %v1115, 0
    %v1128 = vsel %vm479, %v1117, 0
    %v1130 = vsel %vm479, %v1119, 0
    %v1132 = vsel %vm479, %v1121, 0
    %v1134 = vsel %vm479, %v1123, 0
    %v1136 = vsel %vm479, %v1125, 0
    %1138 = vmatprep.subr.mxu0 0.0
    %1139 = vmatpush1.xpose.msra.mxu0 0.0
    %1140 = vmatprep.subr.mxu0 0.0
    %1141 = vmatpush1.xpose.msra.mxu0 0.0
    %1142 = vmatprep.subr.mxu0 0.0
    %1143 = vmatpush1.xpose.msra.mxu0 0.0
    %1144 = vmatprep.subr.mxu0 0.0
    %1145 = vmatpush1.xpose.msra.mxu0 0.0
    %1146 = vmatprep.subr.mxu0 0.0
    %1147 = vmatpush1.xpose.msra.mxu0 0.0
    %1148 = vmatprep.subr.mxu0 0.0
    %1149 = vmatpush1.xpose.msra.mxu0 0.0
    %1150 = vmatprep.subr.mxu0 0.0
    %1151 = vmatpush1.xpose.msra.mxu0 0.0
    %1152 = vmatprep.subr.mxu0 0.0
    %1153 = vmatpush1.xpose.msra.mxu0 0.0
    %1154 = vmatprep.subr.mxu0 0.0
    %1155 = vmatpush1.xpose.msra.mxu0 0.0
    %1156 = vmatprep.subr.mxu0 0.0
    %1157 = vmatpush1.xpose.msra.mxu0 0.0
    %1158 = vmatprep.subr.mxu0 0.0
    %1159 = vmatpush1.xpose.msra.mxu0 0.0
    %1160 = vmatprep.subr.mxu0 0.0
    %1161 = vmatpush1.xpose.msra.mxu0 0.0
    %1162 = vmatprep.subr.mxu0 0.0
    %1163 = vmatpush1.xpose.msra.mxu0 %v1136
    %1164 = vmatprep.subr.mxu0 0.0
    %1165 = vmatpush1.xpose.msra.mxu0 %v1134
    %1166 = vmatprep.subr.mxu0 0.0
    %1167 = vmatpush1.xpose.msra.mxu0 %v1132
    %1168 = vmatprep.subr.mxu0 0.0
    %1169 = vmatpush1.xpose.msra.mxu0 %v1130
    %1170 = vmatprep.subr.mxu0 0.0
    %1171 = vmatpush2.xpose.msra.mxu0 0.0
    %1172 = vmatprep.subr.mxu0 0.0
    %1173 = vmatpush2.xpose.msra.mxu0 0.0
    %1174 = vmatprep.subr.mxu0 0.0
    %1175 = vmatpush2.xpose.msra.mxu0 0.0
    %1176 = vmatprep.subr.mxu0 0.0
    %1177 = vmatpush2.xpose.msra.mxu0 0.0
    %1178 = vmatprep.subr.mxu0 0.0
    %1179 = vmatpush2.xpose.msra.mxu0 0.0
    %1180 = vmatprep.subr.mxu0 0.0
    %1181 = vmatpush2.xpose.msra.mxu0 0.0
    %1182 = vmatprep.subr.mxu0 0.0
    %1183 = vmatpush2.xpose.msra.mxu0 0.0
    %1184 = vmatprep.subr.mxu0 0.0
    %1185 = vmatpush2.xpose.msra.mxu0 0.0
    %1186 = vmatprep.subr.mxu0 0.0
    %1187 = vmatpush2.xpose.msra.mxu0 0.0
    %1188 = vmatprep.subr.mxu0 0.0
    %1189 = vmatpush2.xpose.msra.mxu0 0.0
    %1190 = vmatprep.subr.mxu0 0.0
    %1191 = vmatpush2.xpose.msra.mxu0 0.0
    %1192 = vmatprep.subr.mxu0 0.0
    %1193 = vmatpush2.xpose.msra.mxu0 0.0
    %1194 = vmatprep.subr.mxu0 0.0
    %1195 = vmatpush2.xpose.msra.mxu0 0.0
    %1196 = vmatprep.subr.mxu0 0.0
    %1197 = vmatpush2.xpose.msra.mxu0 0.0
    %1198 = vmatprep.subr.mxu0 0.0
    %1199 = vmatpush2.xpose.msra.mxu0 0.0
    %1200 = vmatprep.subr.mxu0 0.0
    %1201 = vmatpush2.xpose.msra.mxu0 0.0
    %1202 = vmatprep.mubr.f32.mxu0 0.0
    %1203 = vmatmul.mubr.f32.gmra.mxu0 %v1126
    %v1204 = vpop.f32.mrf.mxu0
    %v1205 = vadd.f32 0.0, %v1204
    %v1206 = vpop.f32.mrf.mxu0
    %1207 = vmatprep.mubr.f32.mxu0 0.0
    %1208 = vmatmul.mubr.f32.gmra.mxu0 %v1128
    %v1209 = vpop.f32.mrf.mxu0
    %v1210 = vadd.f32 0.0, %v1209
    %v1211 = vpop.f32.mrf.mxu0
    %1212 = vdwg.mxu0
    %v1213 = vsel %vm477, %v1205, -1e+30
    %v1214 = vsel %vm478, %v1210, -1e+30
    %v1215 = vsel %vm124, %v1213, -inf
    %1216 = vmax.xlane.f32.xlu0 %v1215
    %v1217 = vpop.xlane.xlu0 %1216
    %v1218 = vsel %vm124, %v1214, -inf
    %1219 = vmax.xlane.f32.xlu0 %v1218
    %v1220 = vpop.xlane.xlu0 %1219
    %v1221 = vsub.f32 %v1213, %v1217
    %v1222 = vsub.f32 %v1214, %v1220
    %v1223 = vmul.f32 %v1221, 1.442695
    %v1224 = vpow.pop %v1223
    %v1225 = vmul.f32 %v1222, 1.442695
    %v1226 = vpow.pop %v1225
    %v1227 = vsel %vm124, %v1224, 0.0
    %1228 = vadd.xlane.f32.xlu0 %v1227
    %v1229 = vpop.xlane.xlu0 %1228
    %v1230 = vsel %vm124, %v1226, 0.0
    %1231 = vadd.xlane.f32.xlu0 %v1230
    %v1232 = vpop.xlane.xlu0 %1231
    %v1233 = vrcp.pop %v1229
    %v1234 = vrcp.pop %v1232
    %v1235 = vmul.f32 %v1224, %v1233
    %v1236 = vmul.f32 %v1226, %v1234
    %1237 = vrot.lane.b32.xlu0 %v418, 104
    %v1238 = vpop.permute.xlu0 %1237
    %1239 = vrot.lane.b32.xlu0 %v423, 104
    %v1240 = vpop.permute.xlu0 %1239
    %1241 = vrot.lane.b32.xlu0 %v428, 104
    %v1242 = vpop.permute.xlu0 %1241
    %1243 = vrot.lane.b32.xlu0 %v433, 104
    %v1244 = vpop.permute.xlu0 %1243
    %v1250 = vsel %vm124, %v1235, 0
    %v1253 = vsel %vm124, %v1236, 0
    %1255 = vmatprep.subr.mxu0 0.0
    %1256 = vmatpush1.msra.mxu0 0.0
    %1257 = vmatprep.subr.mxu0 0.0
    %1258 = vmatpush1.msra.mxu0 0.0
    %1259 = vmatprep.subr.mxu0 0.0
    %1260 = vmatpush1.msra.mxu0 0.0
    %1261 = vmatprep.subr.mxu0 0.0
    %1262 = vmatpush1.msra.mxu0 0.0
    %1263 = vmatprep.subr.mxu0 0.0
    %1264 = vmatpush1.msra.mxu0 0.0
    %1265 = vmatprep.subr.mxu0 0.0
    %1266 = vmatpush1.msra.mxu0 0.0
    %1267 = vmatprep.subr.mxu0 0.0
    %1268 = vmatpush1.msra.mxu0 0.0
    %1269 = vmatprep.subr.mxu0 0.0
    %1270 = vmatpush1.msra.mxu0 0.0
    %1271 = vmatprep.subr.mxu0 0.0
    %1272 = vmatpush1.msra.mxu0 0.0
    %1273 = vmatprep.subr.mxu0 0.0
    %1274 = vmatpush1.msra.mxu0 0.0
    %1275 = vmatprep.subr.mxu0 0.0
    %1276 = vmatpush1.msra.mxu0 0.0
    %1277 = vmatprep.subr.mxu0 0.0
    %1278 = vmatpush1.msra.mxu0 0.0
    %1279 = vmatprep.subr.mxu0 0.0
    %1280 = vmatpush1.msra.mxu0 %v1244
    %1281 = vmatprep.subr.mxu0 0.0
    %1282 = vmatpush1.msra.mxu0 %v1242
    %1283 = vmatprep.subr.mxu0 0.0
    %1284 = vmatpush1.msra.mxu0 %v1240
    %1285 = vmatprep.subr.mxu0 0.0
    %1286 = vmatpush1.msra.mxu0 %v1238
    %1287 = vmatprep.subr.mxu0 0.0
    %1288 = vmatpush2.msra.mxu0 0.0
    %1289 = vmatprep.subr.mxu0 0.0
    %1290 = vmatpush2.msra.mxu0 0.0
    %1291 = vmatprep.subr.mxu0 0.0
    %1292 = vmatpush2.msra.mxu0 0.0
    %1293 = vmatprep.subr.mxu0 0.0
    %1294 = vmatpush2.msra.mxu0 0.0
    %1295 = vmatprep.subr.mxu0 0.0
    %1296 = vmatpush2.msra.mxu0 0.0
    %1297 = vmatprep.subr.mxu0 0.0
    %1298 = vmatpush2.msra.mxu0 0.0
    %1299 = vmatprep.subr.mxu0 0.0
    %1300 = vmatpush2.msra.mxu0 0.0
    %1301 = vmatprep.subr.mxu0 0.0
    %1302 = vmatpush2.msra.mxu0 0.0
    %1303 = vmatprep.subr.mxu0 0.0
    %1304 = vmatpush2.msra.mxu0 0.0
    %1305 = vmatprep.subr.mxu0 0.0
    %1306 = vmatpush2.msra.mxu0 0.0
    %1307 = vmatprep.subr.mxu0 0.0
    %1308 = vmatpush2.msra.mxu0 0.0
    %1309 = vmatprep.subr.mxu0 0.0
    %1310 = vmatpush2.msra.mxu0 0.0
    %1311 = vmatprep.subr.mxu0 0.0
    %1312 = vmatpush2.msra.mxu0 0.0
    %1313 = vmatprep.subr.mxu0 0.0
    %1314 = vmatpush2.msra.mxu0 0.0
    %1315 = vmatprep.subr.mxu0 0.0
    %1316 = vmatpush2.msra.mxu0 0.0
    %1317 = vmatprep.subr.mxu0 0.0
    %1318 = vmatpush2.msra.mxu0 0.0
    %1319 = vmatprep.mubr.f32.mxu0 0.0
    %1320 = vmatmul.mubr.f32.gmra.mxu0 %v1250
    %v1321 = vpop.f32.mrf.mxu0
    %v1322 = vadd.f32 0.0, %v1321
    %v1323 = vpop.f32.mrf.mxu0
    %1324 = vmatprep.mubr.f32.mxu0 0.0
    %1325 = vmatmul.mubr.f32.gmra.mxu0 %v1253
    %v1326 = vpop.f32.mrf.mxu0
    %v1327 = vadd.f32 0.0, %v1326
    %v1328 = vpop.f32.mrf.mxu0
    %1329 = vdwg.mxu0
    %1332 = vrot.lane.b32.xlu0 %v890, 8
    %v1333 = vpop.permute.xlu0 %1332
    %1334 = vrot.lane.b32.xlu0 %v895, 8
    %v1335 = vpop.permute.xlu0 %1334
    %1340 = vrot.lane.b32.xlu0 %v1106, 16
    %v1341 = vpop.permute.xlu0 %1340
    %1342 = vrot.lane.b32.xlu0 %v1111, 16
    %v1343 = vpop.permute.xlu0 %1342
    %1348 = vrot.lane.b32.xlu0 %v1322, 24
    %v1349 = vpop.permute.xlu0 %1348
    %1350 = vrot.lane.b32.xlu0 %v1327, 24
    %v1351 = vpop.permute.xlu0 %1350
    %v1354 = vsel %vm479, %v670, %v1333
    %v1355 = vsel %vm479, %v675, %v1335
    %vm1356 = vcmask 130048
    %v1357 = vsel %vm1356, %v1354, %v1341
    %v1358 = vsel %vm1356, %v1355, %v1343
    %vm1359 = vcmask 195584
    %v1360 = vsel %vm1359, %v1357, %v1349
    %v1361 = vsel %vm1359, %v1358, %v1351
    %v1362 = vld [vmem:[#allocation10] sm:$0xff]
    %v1363 = vld [vmem:[#allocation10 + $0x8] sm:$0xff]
    %v1364 = vld [vmem:[#allocation10 + $0x10] sm:$0xff]
    %v1365 = vld [vmem:[#allocation10 + $0x18] sm:$0xff]
    %v1366 = vlaneseq
    %v1367 = vshrl.u32 %v1366, 7
    %v1368 = vsub.s32 0, %v1367
    %v1369 = vrot.slane %v95, %v1368
    %1374 = vrot.lane.b32.xlu0 %v1362, 32
    %v1375 = vpop.permute.xlu0 %1374
    %1376 = vrot.lane.b32.xlu0 %v1363, 32
    %v1377 = vpop.permute.xlu0 %1376
    %1378 = vrot.lane.b32.xlu0 %v1364, 32
    %v1379 = vpop.permute.xlu0 %1378
    %1380 = vrot.lane.b32.xlu0 %v1365, 32
    %v1381 = vpop.permute.xlu0 %1380
    %v1387 = vsel %vm124, %v1360, 0
    %v1390 = vsel %vm124, %v1361, 0
    %1392 = vmatprep.subr.mxu0 0.0
    %1393 = vmatpush1.msra.mxu0 0.0
    %1394 = vmatprep.subr.mxu0 0.0
    %1395 = vmatpush1.msra.mxu0 0.0
    %1396 = vmatprep.subr.mxu0 0.0
    %1397 = vmatpush1.msra.mxu0 0.0
    %1398 = vmatprep.subr.mxu0 0.0
    %1399 = vmatpush1.msra.mxu0 0.0
    %1400 = vmatprep.subr.mxu0 0.0
    %1401 = vmatpush1.msra.mxu0 0.0
    %1402 = vmatprep.subr.mxu0 0.0
    %1403 = vmatpush1.msra.mxu0 0.0
    %1404 = vmatprep.subr.mxu0 0.0
    %1405 = vmatpush1.msra.mxu0 0.0
    %1406 = vmatprep.subr.mxu0 0.0
    %1407 = vmatpush1.msra.mxu0 0.0
    %1408 = vmatprep.subr.mxu0 0.0
    %1409 = vmatpush1.msra.mxu0 0.0
    %1410 = vmatprep.subr.mxu0 0.0
    %1411 = vmatpush1.msra.mxu0 0.0
    %1412 = vmatprep.subr.mxu0 0.0
    %1413 = vmatpush1.msra.mxu0 0.0
    %1414 = vmatprep.subr.mxu0 0.0
    %1415 = vmatpush1.msra.mxu0 0.0
    %1416 = vmatprep.subr.mxu0 0.0
    %1417 = vmatpush1.msra.mxu0 %v1381
    %1418 = vmatprep.subr.mxu0 0.0
    %1419 = vmatpush1.msra.mxu0 %v1379
    %1420 = vmatprep.subr.mxu0 0.0
    %1421 = vmatpush1.msra.mxu0 %v1377
    %1422 = vmatprep.subr.mxu0 0.0
    %1423 = vmatpush1.msra.mxu0 %v1375
    %1424 = vmatprep.subr.mxu0 0.0
    %1425 = vmatpush2.msra.mxu0 0.0
    %1426 = vmatprep.subr.mxu0 0.0
    %1427 = vmatpush2.msra.mxu0 0.0
    %1428 = vmatprep.subr.mxu0 0.0
    %1429 = vmatpush2.msra.mxu0 0.0
    %1430 = vmatprep.subr.mxu0 0.0
    %1431 = vmatpush2.msra.mxu0 0.0
    %1432 = vmatprep.subr.mxu0 0.0
    %1433 = vmatpush2.msra.mxu0 0.0
    %1434 = vmatprep.subr.mxu0 0.0
    %1435 = vmatpush2.msra.mxu0 0.0
    %1436 = vmatprep.subr.mxu0 0.0
    %1437 = vmatpush2.msra.mxu0 0.0
    %1438 = vmatprep.subr.mxu0 0.0
    %1439 = vmatpush2.msra.mxu0 0.0
    %1440 = vmatprep.subr.mxu0 0.0
    %1441 = vmatpush2.msra.mxu0 0.0
    %1442 = vmatprep.subr.mxu0 0.0
    %1443 = vmatpush2.msra.mxu0 0.0
    %1444 = vmatprep.subr.mxu0 0.0
    %1445 = vmatpush2.msra.mxu0 0.0
    %1446 = vmatprep.subr.mxu0 0.0
    %1447 = vmatpush2.msra.mxu0 0.0
    %1448 = vmatprep.subr.mxu0 0.0
    %1449 = vmatpush2.msra.mxu0 0.0
    %1450 = vmatprep.subr.mxu0 0.0
    %1451 = vmatpush2.msra.mxu0 0.0
    %1452 = vmatprep.subr.mxu0 0.0
    %1453 = vmatpush2.msra.mxu0 0.0
    %1454 = vmatprep.subr.mxu0 0.0
    %1455 = vmatpush2.msra.mxu0 0.0
    %1456 = vmatprep.mubr.f32.mxu0 0.0
    %1457 = vmatmul.mubr.f32.gmra.mxu0 %v1387
    %v1458 = vpop.f32.mrf.mxu0
    %v1459 = vadd.f32 %v1369, %v1458
    %v1460 = vpop.f32.mrf.mxu0
    %1461 = vmatprep.mubr.f32.mxu0 0.0
    %1462 = vmatmul.mubr.f32.gmra.mxu0 %v1390
    %v1463 = vpop.f32.mrf.mxu0
    %v1464 = vadd.f32 %v1369, %v1463
    %v1465 = vpop.f32.mrf.mxu0
    %1466 = vdwg.mxu0
    %v1467 = vadd.f32 %v98, %v1459
    %v1468 = vadd.f32 %v99, %v1464
    %v1469 = vsel %vm124, %v1467, 0.0
    %1470 = vadd.xlane.f32.xlu0 %v1469
    %v1471 = vpop.xlane.xlu0 %1470
    %v1472 = vsel %vm124, %v1468, 0.0
    %1473 = vadd.xlane.f32.xlu0 %v1472
    %v1474 = vpop.xlane.xlu0 %1473
    %v1475 = vrcp.pop 32.0
    %v1476 = vmul.f32 %v1471, %v1475
    %v1477 = vmul.f32 %v1474, %v1475
    %v1478 = vsub.f32 %v1467, %v1476
    %v1479 = vsub.f32 %v1468, %v1477
    %v1480 = vmul.f32 %v1478, %v1478
    %v1481 = vmul.f32 %v1479, %v1479
    %v1482 = vsel %vm124, %v1480, 0.0
    %1483 = vadd.xlane.f32.xlu0 %v1482
    %v1484 = vpop.xlane.xlu0 %1483
    %v1485 = vsel %vm124, %v1481, 0.0
    %1486 = vadd.xlane.f32.xlu0 %v1485
    %v1487 = vpop.xlane.xlu0 %1486
    %v1488 = vmul.f32 %v1484, %v1475
    %v1489 = vmul.f32 %v1487, %v1475
    %v1490 = vadd.f32 %v1488, 1e-05
    %v1491 = vadd.f32 %v1489, 1e-05
    %v1492 = vrsqrt.pop %v1490
    %v1493 = vrsqrt.pop %v1491
    %v1494 = vmul.f32 %v1478, %v1492
    %v1495 = vmul.f32 %v1479, %v1493
    %v1496 = vlaneseq
    %v1497 = vshrl.u32 %v1496, 7
    %v1498 = vsub.s32 0, %v1497
    %v1499 = vrot.slane %v96, %v1498
    %v1500 = vmul.f32 %v1494, %v1499
    %v1501 = vmul.f32 %v1495, %v1499
    %v1502 = vlaneseq
    %v1503 = vshrl.u32 %v1502, 7
    %v1504 = vsub.s32 0, %v1503
    %v1505 = vrot.slane %v97, %v1504
    %v1506 = vadd.f32 %v1500, %v1505
    %v1507 = vadd.f32 %v1501, %v1505
    %1508 = vst.msk [vmem:[#allocation11] sm:$0xff] %vm124, %v1506
    %1509 = vst.msk [vmem:[#allocation11 + $0x8] sm:$0xff] %vm124, %v1507
    // Predicated region
    $region46: #{_cross_attention_call.1} parent=1 // pred_check
      _
    $region47: #{_cross_attention_call.1} parent=1 // pred_check_branch
      %1511 = sbr.rel (0) target = $region49
    $region48: #{_cross_attention_call.1} parent=1 // pred_region
      %s1513 = ssub.s32 256, 256
      %1514 = vsyncadd [#allocation4], %s1513
      %s1515 = sshll.u32 [#allocation11], 4
      %s1516 = int_to_ptr.vmem [resolvable:$true] %s1515
      %1521 = dma.vmem_to_hbm [thread:$0]  %s1516, 256, %s6, [#allocation4], 128, 128, 8
    $region49: #{_cross_attention_call.1} parent=1 // pred_fallthru
      _
    // Predicated region
    $region50: #{_cross_attention_call.1} parent=1 // pred_check
      _
    $region51: #{_cross_attention_call.1} parent=1 // pred_check_branch
      %1523 = sbr.rel (0) target = $region53
    $region52: #{_cross_attention_call.1} parent=1 // pred_region
      %1524 = dma.done [#allocation4], 256
    $region53: #{_cross_attention_call.1} parent=1 // pred_fallthru
      _
    %1525 = vsyncpa [#allocation3], 1
    %1526 = vsyncpa [#allocation6], 1
    %1527 = vsyncpa [#allocation9], 1
    %1528 = vsyncpa [#allocation4], 1

</llo_original>
